<compile_context>
chip_gen: v7x
topology: tpu7x:2x2x1
jax: 0.10.0
libtpu: 0.0.40
codegen_flags: <defaults>
</compile_context>

<pallas_src>
import functools

import jax
import jax.numpy as jnp
from jax.experimental import pallas as pl
from jax.experimental.pallas import tpu as pltpu

_LANE = 128    # lane width (last-dim granularity)
_SUBLANE = 8   # f32 sublane count (second-to-last-dim granularity)


def _round_up(x, m):
    return ((x + m - 1) // m) * m


# ----------------------------------------------------------------------------
# Pallas kernel: one grid step == one chunk of TT timesteps.
# The recurrence is carried across chunks in a VMEM scratch buffer.
# ----------------------------------------------------------------------------
def gru_chunk_kernel(maxlen_ref, emb_ref, len_ref, wih_ref, whh_ref,
                     bgi_ref, bhn_ref, out_ref, hid_ref,
                     h_scratch, gi_scratch):
    # maxlen_ref: SMEM (1,) i32   max(seq_lengths) (scalar prefetch)
    # emb_ref : (TT, B, E)        chunk of embedded inputs, time-major, mm dtype
    # len_ref : (B, 1) i32        sequence lengths (padded batch rows = 0)
    # wih_ref : (E, 3H)           W_ih^T, each gate padded to H lanes, mm dtype
    # whh_ref : (H, 3H)           W_hh^T, each gate padded to H lanes, mm dtype
    # bgi_ref : (1, 3H) f32       [b_ih_r+b_hh_r, b_ih_z+b_hh_z, b_ih_n]
    # bhn_ref : (1, H)  f32       b_hh_n
    # out_ref : (TT, B, H) f32    per-step hidden states (0 where t >= length)
    # hid_ref : (1, B, H)  f32    final hidden state (written on last chunk)
    # h_scratch : (B, H) f32      hidden state carried across grid steps
    # gi_scratch: (TT, B, 3H) f32 hoisted input projection for this chunk
    c = pl.program_id(0)
    nc = pl.num_programs(0)
    TT, B, E = emb_ref.shape
    H = h_scratch.shape[-1]

    @pl.when(c == 0)
    def _():
        h_scratch[...] = jnp.zeros_like(h_scratch)

    chunk_active = (c * TT) < maxlen_ref[0]

    @pl.when(jnp.logical_not(chunk_active))
    def _():
        # Every sequence has already ended: just emit zeros, keep h_scratch.
        out_ref[...] = jnp.zeros_like(out_ref)

    @pl.when(chunk_active)
    def _():
        mm_dtype = wih_ref.dtype
        whh = whh_ref[...]                                   # (H, 3H)
        bhn = jnp.broadcast_to(bhn_ref[...], (B, H))         # hoisted broadcast
        lens = jnp.broadcast_to(len_ref[...], (B, H))        # (B, H) int32

        # --- Hoisted input projection: one matmul for TT steps x 3 gates ---
        x_all = emb_ref[...].reshape(TT * B, E)
        gi_all = jnp.dot(x_all, wih_ref[...],
                         preferred_element_type=jnp.float32) + bgi_ref[...]
        gi_scratch[...] = gi_all.reshape(TT, B, 3 * H)

        # --- Serial recurrence: only the hidden matmul on the critical path --
        def step(tl, h_prev):
            gi = gi_scratch[tl]                              # (B, 3H) f32
            gh = jnp.dot(h_prev.astype(mm_dtype), whh,
                         preferred_element_type=jnp.float32)  # (B, 3H) f32
            r = jax.nn.sigmoid(gi[:, 0:H] + gh[:, 0:H])
            z = jax.nn.sigmoid(gi[:, H:2 * H] + gh[:, H:2 * H])
            n = jnp.tanh(gi[:, 2 * H:] + r * (gh[:, 2 * H:] + bhn))
            h_new = (1.0 - z) * n + z * h_prev

            # pack/pad semantics: invalid steps emit 0 and keep previous state.
            valid = lens > (c * TT + tl)                     # (B, H) bool
            out_ref[tl] = jnp.where(valid, h_new, 0.0)
            return jnp.where(valid, h_new, h_prev)

        h = jax.lax.fori_loop(0, TT, step, h_scratch[...],
                              unroll=True if TT <= 16 else 8)
        h_scratch[...] = h

    @pl.when(c == nc - 1)
    def _():
        hid_ref[0] = h_scratch[...]


# ----------------------------------------------------------------------------
# Wrapper: embedding gather (glue) + padding + pallas_call over time chunks.
# ----------------------------------------------------------------------------
def plain_encoder_forward(text, seq_lengths, embedding, w_ih, w_hh, b_ih, b_hh,
                          *, time_chunk=32, use_bf16_matmul=True):
    """text: (B, T) int32 token ids, seq_lengths: (B,) int32.
    Weights follow PyTorch GRU layout: w_ih (3H, E), w_hh (3H, H), biases (3H,).
    Returns (out (B, T, H), hid (1, B, H))."""
    B, T = text.shape
    V, E = embedding.shape
    H = w_hh.shape[1]

    H_pad = _round_up(H, _LANE)     # lane-align gates & output
    E_pad = _round_up(E, _LANE)
    B_pad = _round_up(B, _SUBLANE)  # sublane-align batch
    TT = min(time_chunk, T)
    T_pad = _round_up(T, TT)
    n_chunks = T_pad // TT

    f32 = jnp.float32
    mm_dtype = jnp.bfloat16 if use_bf16_matmul else f32

    # Embedding gather straight into the padded, time-major layout (no data
    # transpose: only the tiny index matrix is transposed).  Stored in mm_dtype
    # (bf16 by default) to halve the HBM stream into the kernel.
    # (Fusing the gather into the kernel with a VMEM-resident table would save
    # the HBM round-trip entirely; kept outside for simplicity at these sizes.)
    emb_table = jnp.pad(embedding.astype(f32), ((0, 0), (0, E_pad - E)))
    text_p = jnp.pad(text.astype(jnp.int32), ((0, B_pad - B), (0, T_pad - T)))
    emb_tm = emb_table[text_p.T].astype(mm_dtype)            # (T_pad, B_pad, E_pad)

    lens_p = jnp.pad(seq_lengths.astype(jnp.int32), (0, B_pad - B))
    lens2d = lens_p[:, None]                                  # (B_pad, 1)
    max_len = jnp.max(seq_lengths.astype(jnp.int32)).reshape((1,))

    # Pad each gate to H_pad lanes so in-kernel gate slices are 128-aligned.
    def pad_gate_cols(w_t):                                  # (K, 3H) -> (K, 3*H_pad)
        parts = [jnp.pad(w_t[:, g * H:(g + 1) * H], ((0, 0), (0, H_pad - H)))
                 for g in range(3)]
        return jnp.concatenate(parts, axis=1)

    wih_t = jnp.pad(pad_gate_cols(jnp.transpose(w_ih).astype(f32)),
                    ((0, E_pad - E), (0, 0))).astype(mm_dtype)   # (E_pad, 3*H_pad)
    whh_t = jnp.pad(pad_gate_cols(jnp.transpose(w_hh).astype(f32)),
                    ((0, H_pad - H), (0, 0))).astype(mm_dtype)   # (H_pad, 3*H_pad)

    # Bias folded into the hoisted input projection:
    #   r/z gates get b_ih + b_hh, n gate gets b_ih only (b_hh_n stays inside
    #   the loop because PyTorch's GRU computes r * (W_hn h + b_hn)).
    def pad_gate_bias(parts):                                # 3 x (H,) -> (1, 3*H_pad)
        return jnp.concatenate(
            [jnp.pad(p, (0, H_pad - H)) for p in parts])[None, :]

    b_ih_f = b_ih.astype(f32)
    b_hh_f = b_hh.astype(f32)
    b_gi = pad_gate_bias([b_ih_f[0:H] + b_hh_f[0:H],
                          b_ih_f[H:2 * H] + b_hh_f[H:2 * H],
                          b_ih_f[2 * H:3 * H]])              # (1, 3*H_pad)
    b_hn = jnp.pad(b_hh_f[2 * H:3 * H], (0, H_pad - H))[None, :]  # (1, H_pad)

    grid_spec = pltpu.PrefetchScalarGridSpec(
        num_scalar_prefetch=1,          # max_len -> SMEM
        grid=(n_chunks,),
        in_specs=[
            pl.BlockSpec((TT, B_pad, E_pad), lambda c, ml: (c, 0, 0)),   # emb chunk
            pl.BlockSpec((B_pad, 1), lambda c, ml: (0, 0)),              # lengths
            pl.BlockSpec((E_pad, 3 * H_pad), lambda c, ml: (0, 0)),      # W_ih^T
            pl.BlockSpec((H_pad, 3 * H_pad), lambda c, ml: (0, 0)),      # W_hh^T
            pl.BlockSpec((1, 3 * H_pad), lambda c, ml: (0, 0)),          # folded bias
            pl.BlockSpec((1, H_pad), lambda c, ml: (0, 0)),              # b_hh_n
        ],
        out_specs=[
            pl.BlockSpec((TT, B_pad, H_pad), lambda c, ml: (c, 0, 0)),   # out chunk
            pl.BlockSpec((1, B_pad, H_pad), lambda c, ml: (0, 0, 0)),    # final hidden
        ],
        scratch_shapes=[
            pltpu.VMEM((B_pad, H_pad), jnp.float32),            # carried h
            pltpu.VMEM((TT, B_pad, 3 * H_pad), jnp.float32),    # hoisted gi
        ],
    )

    out_tm, hid = pl.pallas_call(
        gru_chunk_kernel,
        out_shape=(
            jax.ShapeDtypeStruct((T_pad, B_pad, H_pad), f32),
            jax.ShapeDtypeStruct((1, B_pad, H_pad), f32),
        ),
        grid_spec=grid_spec,
        compiler_params=pltpu.CompilerParams(
            dimension_semantics=("arbitrary",)),   # time recurrence -> sequential
    )(max_len, emb_tm, lens2d, wih_t, whh_t, b_gi, b_hn)

    out = jnp.swapaxes(out_tm[:T, :B, :H], 0, 1)             # (B, T, H)
    return out, hid[:, :B, :H]


# ----------------------------------------------------------------------------
# Pure-JAX reference (for a quick numeric check).
# ----------------------------------------------------------------------------
def ref_forward(text, seq_lengths, embedding, w_ih, w_hh, b_ih, b_hh):
    emb = embedding[text].astype(jnp.float32)
    B, T, E = emb.shape
    H = w_hh.shape[1]
    wih_t, whh_t = jnp.transpose(w_ih), jnp.transpose(w_hh)
    h0 = jnp.zeros((B, H), jnp.float32)

    def step(h, args):
        xt, tt = args
        gi = xt @ wih_t + b_ih
        gh = h @ whh_t + b_hh
        r = jax.nn.sigmoid(gi[:, :H] + gh[:, :H])
        z = jax.nn.sigmoid(gi[:, H:2 * H] + gh[:, H:2 * H])
        n = jnp.tanh(gi[:, 2 * H:] + r * gh[:, 2 * H:])
        h_new = (1.0 - z) * n + z * h
        valid = (seq_lengths > tt)[:, None]
        out_t = jnp.where(valid, h_new, 0.0)
        h_next = jnp.where(valid, h_new, h)
        return h_next, out_t

    h_final, outs = jax.lax.scan(step, h0, (jnp.swapaxes(emb, 0, 1), jnp.arange(T)))
    return jnp.swapaxes(outs, 0, 1), h_final[None]


if __name__ == "__main__":
    vocab_size, embed_size, hidden_size = 50, 100, 100     # module defaults E=H=100
    B, T = 4, 8

    key = jax.random.PRNGKey(0)
    k_emb, k_ih, k_hh, k_bih, k_bhh, k_txt = jax.random.split(key, 6)

    # Deterministic parameter init (mirrors nn.Embedding / nn.GRU init schemes).
    embedding = jax.random.normal(k_emb, (vocab_size, embed_size), jnp.float32)
    bound = 1.0 / float(hidden_size) ** 0.5
    w_ih = jax.random.uniform(k_ih, (3 * hidden_size, embed_size), jnp.float32, -bound, bound)
    w_hh = jax.random.uniform(k_hh, (3 * hidden_size, hidden_size), jnp.float32, -bound, bound)
    b_ih = jax.random.uniform(k_bih, (3 * hidden_size,), jnp.float32, -bound, bound)
    b_hh = jax.random.uniform(k_bhh, (3 * hidden_size,), jnp.float32, -bound, bound)

    text = jax.random.randint(k_txt, (B, T), 0, vocab_size, dtype=jnp.int32)
    seq_lengths = jnp.array([T, 5, 3, 6], dtype=jnp.int32)   # max length == T

    fwd = jax.jit(functools.partial(plain_encoder_forward))
    out, hid = fwd(text, seq_lengths, embedding, w_ih, w_hh, b_ih, b_hh)
    jax.block_until_ready((out, hid))

    out_ref, hid_ref = ref_forward(text, seq_lengths, embedding, w_ih, w_hh, b_ih, b_hh)
    assert out.shape == (B, T, hidden_size) and hid.shape == (1, B, hidden_size)
    # pack/pad masking must be exact (timesteps beyond each length are 0)
    for b in range(B):
        assert bool(jnp.all(out[b, int(seq_lengths[b]):] == 0.0)), "mask mismatch"
    # Numeric check. Tolerance covers bf16 MXU operands (f32 accumulation and
    # f32 gate math/recurrent state) vs the plain-JAX f32 reference.
    assert jnp.allclose(out, out_ref, atol=3e-2, rtol=3e-2), "out mismatch vs reference"
    assert jnp.allclose(hid, hid_ref, atol=3e-2, rtol=3e-2), "hid mismatch vs reference"

    print("KERNEL_OK")
</pallas_src>

<mosaic_0001>
module attributes {stable_mosaic.version = 11 : i64} {
  func.func @gru_chunk_kernel(%arg0: i32, %arg1: memref<1xi32, #tpu.memory_space<smem>>, %arg2: memref<8x8x128xbf16, #tpu.memory_space<vmem>>, %arg3: memref<8x1xi32, #tpu.memory_space<vmem>>, %arg4: memref<128x384xbf16, #tpu.memory_space<vmem>>, %arg5: memref<128x384xbf16, #tpu.memory_space<vmem>>, %arg6: memref<1x384xf32, #tpu.memory_space<vmem>>, %arg7: memref<1x128xf32, #tpu.memory_space<vmem>>, %arg8: memref<8x8x128xf32, #tpu.memory_space<vmem>>, %arg9: memref<1x8x128xf32, #tpu.memory_space<vmem>>, %arg10: memref<8x128xf32, #tpu.memory_space<vmem>>, %arg11: memref<8x8x384xf32, #tpu.memory_space<vmem>>) attributes {dimension_semantics = [#tpu.dimension_semantics<arbitrary>], iteration_bounds = array<i64: 1>, scalar_prefetch = 1 : i64, scratch_operands = 2 : i64, tpu.core_type = #tpu.core_type<tc>, window_params = [{transform_indices = @transform_0, window_bounds = array<i64: 8, 8, 128>}, {pipeline_mode = #tpu.pipeline_mode<synchronous>, transform_indices = @transform_1, window_bounds = array<i64: 8, 1>}, {pipeline_mode = #tpu.pipeline_mode<synchronous>, transform_indices = @transform_2, window_bounds = array<i64: 128, 384>}, {pipeline_mode = #tpu.pipeline_mode<synchronous>, transform_indices = @transform_3, window_bounds = array<i64: 128, 384>}, {pipeline_mode = #tpu.pipeline_mode<synchronous>, transform_indices = @transform_4, window_bounds = array<i64: 1, 384>}, {pipeline_mode = #tpu.pipeline_mode<synchronous>, transform_indices = @transform_5, window_bounds = array<i64: 1, 128>}, {transform_indices = @transform_6, window_bounds = array<i64: 8, 8, 128>}, {pipeline_mode = #tpu.pipeline_mode<synchronous>, transform_indices = @transform_7, window_bounds = array<i64: 1, 8, 128>}]} {
    %c0_i32 = arith.constant 0 : i32
    %0 = arith.cmpi eq, %arg0, %c0_i32 : i32
    %1 = arith.extui %0 : i1 to i32
    %c0_i32_0 = arith.constant 0 : i32
    %2 = arith.cmpi ne, %1, %c0_i32_0 : i32
    scf.if %2 {
      %cst = arith.constant 0.000000e+00 : f32
      %14 = vector.broadcast %cst : f32 to vector<8x128xf32>
      %c0_5 = arith.constant 0 : index
      %c0_6 = arith.constant 0 : index
      %15 = vector.load %arg10[%c0_5, %c0_6] : memref<8x128xf32, #tpu.memory_space<vmem>>, vector<8x128xf32>
      tpu.vector_store %arg10[%c0_5, %c0_6], %14 {strides = array<i32>} : memref<8x128xf32, #tpu.memory_space<vmem>>, vector<8x128xf32>,
    } else {
    }
    %c8_i32 = arith.constant 8 : i32
    %3 = arith.muli %arg0, %c8_i32 : i32
    %c0 = arith.constant 0 : index
    %4 = memref.load %arg1[%c0] : memref<1xi32, #tpu.memory_space<smem>>
    %5 = arith.cmpi slt, %3, %4 : i32
    %true = arith.constant true
    %6 = arith.xori %5, %true : i1
    %7 = arith.extui %6 : i1 to i32
    %c0_i32_1 = arith.constant 0 : i32
    %8 = arith.cmpi ne, %7, %c0_i32_1 : i32
    scf.if %8 {
      %cst = arith.constant 0.000000e+00 : f32
      %14 = vector.broadcast %cst : f32 to vector<8x8x128xf32>
      %c0_5 = arith.constant 0 : index
      %c0_6 = arith.constant 0 : index
      %c0_7 = arith.constant 0 : index
      %15 = vector.load %arg8[%c0_5, %c0_6, %c0_7] : memref<8x8x128xf32, #tpu.memory_space<vmem>>, vector<8x8x128xf32>
      tpu.vector_store %arg8[%c0_5, %c0_6, %c0_7], %14 {strides = array<i32>} : memref<8x8x128xf32, #tpu.memory_space<vmem>>, vector<8x8x128xf32>,
    } else {
    }
    %9 = arith.extui %5 : i1 to i32
    %c0_i32_2 = arith.constant 0 : i32
    %10 = arith.cmpi ne, %9, %c0_i32_2 : i32
    scf.if %10 {
      %c0_5 = arith.constant 0 : index
      %c0_6 = arith.constant 0 : index
      %14 = vector.load %arg5[%c0_5, %c0_6] : memref<128x384xbf16, #tpu.memory_space<vmem>>, vector<128x384xbf16>
      %c0_7 = arith.constant 0 : index
      %c0_8 = arith.constant 0 : index
      %15 = vector.load %arg7[%c0_7, %c0_8] : memref<1x128xf32, #tpu.memory_space<vmem>>, vector<1x128xf32>
      %16 = vector.shape_cast %15 : vector<1x128xf32> to vector<1x128xf32>
      %17 = vector.broadcast %16 : vector<1x128xf32> to vector<8x128xf32>
      %c0_9 = arith.constant 0 : index
      %c0_10 = arith.constant 0 : index
      %18 = vector.load %arg3[%c0_9, %c0_10] : memref<8x1xi32, #tpu.memory_space<vmem>>, vector<8x1xi32>
      %19 = vector.shape_cast %18 : vector<8x1xi32> to vector<8x1xi32>
      %20 = vector.broadcast %19 : vector<8x1xi32> to vector<8x128xi32>
      %c0_11 = arith.constant 0 : index
      %c0_12 = arith.constant 0 : index
      %c0_13 = arith.constant 0 : index
      %21 = vector.load %arg2[%c0_11, %c0_12, %c0_13] : memref<8x8x128xbf16, #tpu.memory_space<vmem>>, vector<8x8x128xbf16>
      %22 = vector.shape_cast %21 : vector<8x8x128xbf16> to vector<64x128xbf16>
      %c0_14 = arith.constant 0 : index
      %c0_15 = arith.constant 0 : index
      %23 = vector.load %arg4[%c0_14, %c0_15] : memref<128x384xbf16, #tpu.memory_space<vmem>>, vector<128x384xbf16>
      %cst = arith.constant dense<0.000000e+00> : vector<64x384xf32>
      %24 = tpu.matmul %22, %23, %cst {dimension_numbers = #tpu.dot_dimension_numbers<[1], [0], [0], [1], [0, 0, 1, 1], [], []>} : vector<64x128xbf16>, vector<128x384xbf16>, vector<64x384xf32> -> vector<64x384xf32>
      %c0_16 = arith.constant 0 : index
      %c0_17 = arith.constant 0 : index
      %25 = vector.load %arg6[%c0_16, %c0_17] : memref<1x384xf32, #tpu.memory_space<vmem>>, vector<1x384xf32>
      %26 = vector.broadcast %25 : vector<1x384xf32> to vector<64x384xf32>
      %27 = arith.addf %24, %26 : vector<64x384xf32>
      %28 = vector.shape_cast %27 : vector<64x384xf32> to vector<8x8x384xf32>
      %c0_18 = arith.constant 0 : index
      %c0_19 = arith.constant 0 : index
      %c0_20 = arith.constant 0 : index
      %29 = vector.load %arg11[%c0_18, %c0_19, %c0_20] : memref<8x8x384xf32, #tpu.memory_space<vmem>>, vector<8x8x384xf32>
      tpu.vector_store %arg11[%c0_18, %c0_19, %c0_20], %28 {strides = array<i32>} : memref<8x8x384xf32, #tpu.memory_space<vmem>>, vector<8x8x384xf32>,
      %c0_21 = arith.constant 0 : index
      %c0_22 = arith.constant 0 : index
      %30 = vector.load %arg10[%c0_21, %c0_22] : memref<8x128xf32, #tpu.memory_space<vmem>>, vector<8x128xf32>
      %c0_i32_23 = arith.constant 0 : i32
      %31 = arith.index_cast %c0_i32_23 : i32 to index
      %c0_24 = arith.constant 0 : index
      %c0_25 = arith.constant 0 : index
      %32 = vector.load %arg11[%31, %c0_24, %c0_25] : memref<8x8x384xf32, #tpu.memory_space<vmem>>, vector<1x8x384xf32>
      %33 = vector.shape_cast %32 : vector<1x8x384xf32> to vector<8x384xf32>
      %34 = arith.truncf %30 : vector<8x128xf32> to vector<8x128xbf16>
      %cst_26 = arith.constant dense<0.000000e+00> : vector<8x384xf32>
      %35 = tpu.matmul %34, %14, %cst_26 {dimension_numbers = #tpu.dot_dimension_numbers<[1], [0], [0], [1], [0, 0, 1, 1], [], []>} : vector<8x128xbf16>, vector<128x384xbf16>, vector<8x384xf32> -> vector<8x384xf32>
      %36 = vector.extract_strided_slice %33 {offsets = [0, 0], sizes = [8, 128], strides = [1, 1]} : vector<8x384xf32> to vector<8x128xf32>
      %37 = vector.extract_strided_slice %35 {offsets = [0, 0], sizes = [8, 128], strides = [1, 1]} : vector<8x384xf32> to vector<8x128xf32>
      %38 = arith.addf %36, %37 : vector<8x128xf32>
      %39 = arith.negf %38 : vector<8x128xf32>
      %40 = math.exp %39 : vector<8x128xf32>
      %cst_27 = arith.constant 1.000000e+00 : f32
      %41 = vector.broadcast %cst_27 : f32 to vector<8x128xf32>
      %42 = arith.addf %41, %40 : vector<8x128xf32>
      %43 = arith.divf %41, %42 : vector<8x128xf32>
      %44 = vector.extract_strided_slice %33 {offsets = [0, 128], sizes = [8, 128], strides = [1, 1]} : vector<8x384xf32> to vector<8x128xf32>
      %45 = vector.extract_strided_slice %35 {offsets = [0, 128], sizes = [8, 128], strides = [1, 1]} : vector<8x384xf32> to vector<8x128xf32>
      %46 = arith.addf %44, %45 : vector<8x128xf32>
      %47 = arith.negf %46 : vector<8x128xf32>
      %48 = math.exp %47 : vector<8x128xf32>
      %cst_28 = arith.constant 1.000000e+00 : f32
      %49 = vector.broadcast %cst_28 : f32 to vector<8x128xf32>
      %50 = arith.addf %49, %48 : vector<8x128xf32>
      %51 = arith.divf %49, %50 : vector<8x128xf32>
      %52 = vector.extract_strided_slice %33 {offsets = [0, 256], sizes = [8, 128], strides = [1, 1]} : vector<8x384xf32> to vector<8x128xf32>
      %53 = vector.extract_strided_slice %35 {offsets = [0, 256], sizes = [8, 128], strides = [1, 1]} : vector<8x384xf32> to vector<8x128xf32>
      %54 = arith.addf %53, %17 : vector<8x128xf32>
      %55 = arith.mulf %43, %54 : vector<8x128xf32>
      %56 = arith.addf %52, %55 : vector<8x128xf32>
      %57 = math.tanh %56 : vector<8x128xf32>
      %cst_29 = arith.constant 1.000000e+00 : f32
      %58 = vector.broadcast %cst_29 : f32 to vector<8x128xf32>
      %59 = arith.subf %58, %51 : vector<8x128xf32>
      %60 = arith.mulf %59, %57 : vector<8x128xf32>
      %61 = arith.mulf %51, %30 : vector<8x128xf32>
      %62 = arith.addf %60, %61 : vector<8x128xf32>
      %c8_i32_30 = arith.constant 8 : i32
      %63 = arith.muli %arg0, %c8_i32_30 : i32
      %64 = arith.addi %63, %c0_i32_23 : i32
      %65 = vector.broadcast %64 : i32 to vector<8x128xi32>
      %66 = arith.cmpi sgt, %20, %65 : vector<8x128xi32>
      %cst_31 = arith.constant 0.000000e+00 : f32
      %67 = vector.broadcast %cst_31 : f32 to vector<8x128xf32>
      %68 = arith.select %66, %62, %67 : vector<8x128xi1>, vector<8x128xf32>
      %69 = arith.index_cast %c0_i32_23 : i32 to index
      %c0_32 = arith.constant 0 : index
      %c0_33 = arith.constant 0 : index
      %70 = vector.load %arg8[%69, %c0_32, %c0_33] : memref<8x8x128xf32, #tpu.memory_space<vmem>>, vector<1x8x128xf32>
      %71 = vector.shape_cast %70 : vector<1x8x128xf32> to vector<8x128xf32>
      %72 = vector.shape_cast %68 : vector<8x128xf32> to vector<1x8x128xf32>
      tpu.vector_store %arg8[%69, %c0_32, %c0_33], %72 {strides = array<i32>} : memref<8x8x128xf32, #tpu.memory_space<vmem>>, vector<1x8x128xf32>,
      %73 = arith.select %66, %62, %30 : vector<8x128xi1>, vector<8x128xf32>
      %c1_i32 = arith.constant 1 : i32
      %74 = arith.index_cast %c1_i32 : i32 to index
      %c0_34 = arith.constant 0 : index
      %c0_35 = arith.constant 0 : index
      %75 = vector.load %arg11[%74, %c0_34, %c0_35] : memref<8x8x384xf32, #tpu.memory_space<vmem>>, vector<1x8x384xf32>
      %76 = vector.shape_cast %75 : vector<1x8x384xf32> to vector<8x384xf32>
      %77 = arith.truncf %73 : vector<8x128xf32> to vector<8x128xbf16>
      %cst_36 = arith.constant dense<0.000000e+00> : vector<8x384xf32>
      %78 = tpu.matmul %77, %14, %cst_36 {dimension_numbers = #tpu.dot_dimension_numbers<[1], [0], [0], [1], [0, 0, 1, 1], [], []>} : vector<8x128xbf16>, vector<128x384xbf16>, vector<8x384xf32> -> vector<8x384xf32>
      %79 = vector.extract_strided_slice %76 {offsets = [0, 0], sizes = [8, 128], strides = [1, 1]} : vector<8x384xf32> to vector<8x128xf32>
      %80 = vector.extract_strided_slice %78 {offsets = [0, 0], sizes = [8, 128], strides = [1, 1]} : vector<8x384xf32> to vector<8x128xf32>
      %81 = arith.addf %79, %80 : vector<8x128xf32>
      %82 = arith.negf %81 : vector<8x128xf32>
      %83 = math.exp %82 : vector<8x128xf32>
      %cst_37 = arith.constant 1.000000e+00 : f32
      %84 = vector.broadcast %cst_37 : f32 to vector<8x128xf32>
      %85 = arith.addf %84, %83 : vector<8x128xf32>
      %86 = arith.divf %84, %85 : vector<8x128xf32>
      %87 = vector.extract_strided_slice %76 {offsets = [0, 128], sizes = [8, 128], strides = [1, 1]} : vector<8x384xf32> to vector<8x128xf32>
      %88 = vector.extract_strided_slice %78 {offsets = [0, 128], sizes = [8, 128], strides = [1, 1]} : vector<8x384xf32> to vector<8x128xf32>
      %89 = arith.addf %87, %88 : vector<8x128xf32>
      %90 = arith.negf %89 : vector<8x128xf32>
      %91 = math.exp %90 : vector<8x128xf32>
      %cst_38 = arith.constant 1.000000e+00 : f32
      %92 = vector.broadcast %cst_38 : f32 to vector<8x128xf32>
      %93 = arith.addf %92, %91 : vector<8x128xf32>
      %94 = arith.divf %92, %93 : vector<8x128xf32>
      %95 = vector.extract_strided_slice %76 {offsets = [0, 256], sizes = [8, 128], strides = [1, 1]} : vector<8x384xf32> to vector<8x128xf32>
      %96 = vector.extract_strided_slice %78 {offsets = [0, 256], sizes = [8, 128], strides = [1, 1]} : vector<8x384xf32> to vector<8x128xf32>
      %97 = arith.addf %96, %17 : vector<8x128xf32>
      %98 = arith.mulf %86, %97 : vector<8x128xf32>
      %99 = arith.addf %95, %98 : vector<8x128xf32>
      %100 = math.tanh %99 : vector<8x128xf32>
      %cst_39 = arith.constant 1.000000e+00 : f32
      %101 = vector.broadcast %cst_39 : f32 to vector<8x128xf32>
      %102 = arith.subf %101, %94 : vector<8x128xf32>
      %103 = arith.mulf %102, %100 : vector<8x128xf32>
      %104 = arith.mulf %94, %73 : vector<8x128xf32>
      %105 = arith.addf %103, %104 : vector<8x128xf32>
      %c8_i32_40 = arith.constant 8 : i32
      %106 = arith.muli %arg0, %c8_i32_40 : i32
      %107 = arith.addi %106, %c1_i32 : i32
      %108 = vector.broadcast %107 : i32 to vector<8x128xi32>
      %109 = arith.cmpi sgt, %20, %108 : vector<8x128xi32>
      %cst_41 = arith.constant 0.000000e+00 : f32
      %110 = vector.broadcast %cst_41 : f32 to vector<8x128xf32>
      %111 = arith.select %109, %105, %110 : vector<8x128xi1>, vector<8x128xf32>
      %112 = arith.index_cast %c1_i32 : i32 to index
      %c0_42 = arith.constant 0 : index
      %c0_43 = arith.constant 0 : index
      %113 = vector.load %arg8[%112, %c0_42, %c0_43] : memref<8x8x128xf32, #tpu.memory_space<vmem>>, vector<1x8x128xf32>
      %114 = vector.shape_cast %113 : vector<1x8x128xf32> to vector<8x128xf32>
      %115 = vector.shape_cast %111 : vector<8x128xf32> to vector<1x8x128xf32>
      tpu.vector_store %arg8[%112, %c0_42, %c0_43], %115 {strides = array<i32>} : memref<8x8x128xf32, #tpu.memory_space<vmem>>, vector<1x8x128xf32>,
      %116 = arith.select %109, %105, %73 : vector<8x128xi1>, vector<8x128xf32>
      %c2_i32 = arith.constant 2 : i32
      %117 = arith.index_cast %c2_i32 : i32 to index
      %c0_44 = arith.constant 0 : index
      %c0_45 = arith.constant 0 : index
      %118 = vector.load %arg11[%117, %c0_44, %c0_45] : memref<8x8x384xf32, #tpu.memory_space<vmem>>, vector<1x8x384xf32>
      %119 = vector.shape_cast %118 : vector<1x8x384xf32> to vector<8x384xf32>
      %120 = arith.truncf %116 : vector<8x128xf32> to vector<8x128xbf16>
      %cst_46 = arith.constant dense<0.000000e+00> : vector<8x384xf32>
      %121 = tpu.matmul %120, %14, %cst_46 {dimension_numbers = #tpu.dot_dimension_numbers<[1], [0], [0], [1], [0, 0, 1, 1], [], []>} : vector<8x128xbf16>, vector<128x384xbf16>, vector<8x384xf32> -> vector<8x384xf32>
      %122 = vector.extract_strided_slice %119 {offsets = [0, 0], sizes = [8, 128], strides = [1, 1]} : vector<8x384xf32> to vector<8x128xf32>
      %123 = vector.extract_strided_slice %121 {offsets = [0, 0], sizes = [8, 128], strides = [1, 1]} : vector<8x384xf32> to vector<8x128xf32>
      %124 = arith.addf %122, %123 : vector<8x128xf32>
      %125 = arith.negf %124 : vector<8x128xf32>
      %126 = math.exp %125 : vector<8x128xf32>
      %cst_47 = arith.constant 1.000000e+00 : f32
      %127 = vector.broadcast %cst_47 : f32 to vector<8x128xf32>
      %128 = arith.addf %127, %126 : vector<8x128xf32>
      %129 = arith.divf %127, %128 : vector<8x128xf32>
      %130 = vector.extract_strided_slice %119 {offsets = [0, 128], sizes = [8, 128], strides = [1, 1]} : vector<8x384xf32> to vector<8x128xf32>
      %131 = vector.extract_strided_slice %121 {offsets = [0, 128], sizes = [8, 128], strides = [1, 1]} : vector<8x384xf32> to vector<8x128xf32>
      %132 = arith.addf %130, %131 : vector<8x128xf32>
      %133 = arith.negf %132 : vector<8x128xf32>
      %134 = math.exp %133 : vector<8x128xf32>
      %cst_48 = arith.constant 1.000000e+00 : f32
      %135 = vector.broadcast %cst_48 : f32 to vector<8x128xf32>
      %136 = arith.addf %135, %134 : vector<8x128xf32>
      %137 = arith.divf %135, %136 : vector<8x128xf32>
      %138 = vector.extract_strided_slice %119 {offsets = [0, 256], sizes = [8, 128], strides = [1, 1]} : vector<8x384xf32> to vector<8x128xf32>
      %139 = vector.extract_strided_slice %121 {offsets = [0, 256], sizes = [8, 128], strides = [1, 1]} : vector<8x384xf32> to vector<8x128xf32>
      %140 = arith.addf %139, %17 : vector<8x128xf32>
      %141 = arith.mulf %129, %140 : vector<8x128xf32>
      %142 = arith.addf %138, %141 : vector<8x128xf32>
      %143 = math.tanh %142 : vector<8x128xf32>
      %cst_49 = arith.constant 1.000000e+00 : f32
      %144 = vector.broadcast %cst_49 : f32 to vector<8x128xf32>
      %145 = arith.subf %144, %137 : vector<8x128xf32>
      %146 = arith.mulf %145, %143 : vector<8x128xf32>
      %147 = arith.mulf %137, %116 : vector<8x128xf32>
      %148 = arith.addf %146, %147 : vector<8x128xf32>
      %c8_i32_50 = arith.constant 8 : i32
      %149 = arith.muli %arg0, %c8_i32_50 : i32
      %150 = arith.addi %149, %c2_i32 : i32
      %151 = vector.broadcast %150 : i32 to vector<8x128xi32>
      %152 = arith.cmpi sgt, %20, %151 : vector<8x128xi32>
      %cst_51 = arith.constant 0.000000e+00 : f32
      %153 = vector.broadcast %cst_51 : f32 to vector<8x128xf32>
      %154 = arith.select %152, %148, %153 : vector<8x128xi1>, vector<8x128xf32>
      %155 = arith.index_cast %c2_i32 : i32 to index
      %c0_52 = arith.constant 0 : index
      %c0_53 = arith.constant 0 : index
      %156 = vector.load %arg8[%155, %c0_52, %c0_53] : memref<8x8x128xf32, #tpu.memory_space<vmem>>, vector<1x8x128xf32>
      %157 = vector.shape_cast %156 : vector<1x8x128xf32> to vector<8x128xf32>
      %158 = vector.shape_cast %154 : vector<8x128xf32> to vector<1x8x128xf32>
      tpu.vector_store %arg8[%155, %c0_52, %c0_53], %158 {strides = array<i32>} : memref<8x8x128xf32, #tpu.memory_space<vmem>>, vector<1x8x128xf32>,
      %159 = arith.select %152, %148, %116 : vector<8x128xi1>, vector<8x128xf32>
      %c3_i32 = arith.constant 3 : i32
      %160 = arith.index_cast %c3_i32 : i32 to index
      %c0_54 = arith.constant 0 : index
      %c0_55 = arith.constant 0 : index
      %161 = vector.load %arg11[%160, %c0_54, %c0_55] : memref<8x8x384xf32, #tpu.memory_space<vmem>>, vector<1x8x384xf32>
      %162 = vector.shape_cast %161 : vector<1x8x384xf32> to vector<8x384xf32>
      %163 = arith.truncf %159 : vector<8x128xf32> to vector<8x128xbf16>
      %cst_56 = arith.constant dense<0.000000e+00> : vector<8x384xf32>
      %164 = tpu.matmul %163, %14, %cst_56 {dimension_numbers = #tpu.dot_dimension_numbers<[1], [0], [0], [1], [0, 0, 1, 1], [], []>} : vector<8x128xbf16>, vector<128x384xbf16>, vector<8x384xf32> -> vector<8x384xf32>
      %165 = vector.extract_strided_slice %162 {offsets = [0, 0], sizes = [8, 128], strides = [1, 1]} : vector<8x384xf32> to vector<8x128xf32>
      %166 = vector.extract_strided_slice %164 {offsets = [0, 0], sizes = [8, 128], strides = [1, 1]} : vector<8x384xf32> to vector<8x128xf32>
      %167 = arith.addf %165, %166 : vector<8x128xf32>
      %168 = arith.negf %167 : vector<8x128xf32>
      %169 = math.exp %168 : vector<8x128xf32>
      %cst_57 = arith.constant 1.000000e+00 : f32
      %170 = vector.broadcast %cst_57 : f32 to vector<8x128xf32>
      %171 = arith.addf %170, %169 : vector<8x128xf32>
      %172 = arith.divf %170, %171 : vector<8x128xf32>
      %173 = vector.extract_strided_slice %162 {offsets = [0, 128], sizes = [8, 128], strides = [1, 1]} : vector<8x384xf32> to vector<8x128xf32>
      %174 = vector.extract_strided_slice %164 {offsets = [0, 128], sizes = [8, 128], strides = [1, 1]} : vector<8x384xf32> to vector<8x128xf32>
      %175 = arith.addf %173, %174 : vector<8x128xf32>
      %176 = arith.negf %175 : vector<8x128xf32>
      %177 = math.exp %176 : vector<8x128xf32>
      %cst_58 = arith.constant 1.000000e+00 : f32
      %178 = vector.broadcast %cst_58 : f32 to vector<8x128xf32>
      %179 = arith.addf %178, %177 : vector<8x128xf32>
      %180 = arith.divf %178, %179 : vector<8x128xf32>
      %181 = vector.extract_strided_slice %162 {offsets = [0, 256], sizes = [8, 128], strides = [1, 1]} : vector<8x384xf32> to vector<8x128xf32>
      %182 = vector.extract_strided_slice %164 {offsets = [0, 256], sizes = [8, 128], strides = [1, 1]} : vector<8x384xf32> to vector<8x128xf32>
      %183 = arith.addf %182, %17 : vector<8x128xf32>
      %184 = arith.mulf %172, %183 : vector<8x128xf32>
      %185 = arith.addf %181, %184 : vector<8x128xf32>
      %186 = math.tanh %185 : vector<8x128xf32>
      %cst_59 = arith.constant 1.000000e+00 : f32
      %187 = vector.broadcast %cst_59 : f32 to vector<8x128xf32>
      %188 = arith.subf %187, %180 : vector<8x128xf32>
      %189 = arith.mulf %188, %186 : vector<8x128xf32>
      %190 = arith.mulf %180, %159 : vector<8x128xf32>
      %191 = arith.addf %189, %190 : vector<8x128xf32>
      %c8_i32_60 = arith.constant 8 : i32
      %192 = arith.muli %arg0, %c8_i32_60 : i32
      %193 = arith.addi %192, %c3_i32 : i32
      %194 = vector.broadcast %193 : i32 to vector<8x128xi32>
      %195 = arith.cmpi sgt, %20, %194 : vector<8x128xi32>
      %cst_61 = arith.constant 0.000000e+00 : f32
      %196 = vector.broadcast %cst_61 : f32 to vector<8x128xf32>
      %197 = arith.select %195, %191, %196 : vector<8x128xi1>, vector<8x128xf32>
      %198 = arith.index_cast %c3_i32 : i32 to index
      %c0_62 = arith.constant 0 : index
      %c0_63 = arith.constant 0 : index
      %199 = vector.load %arg8[%198, %c0_62, %c0_63] : memref<8x8x128xf32, #tpu.memory_space<vmem>>, vector<1x8x128xf32>
      %200 = vector.shape_cast %199 : vector<1x8x128xf32> to vector<8x128xf32>
      %201 = vector.shape_cast %197 : vector<8x128xf32> to vector<1x8x128xf32>
      tpu.vector_store %arg8[%198, %c0_62, %c0_63], %201 {strides = array<i32>} : memref<8x8x128xf32, #tpu.memory_space<vmem>>, vector<1x8x128xf32>,
      %202 = arith.select %195, %191, %159 : vector<8x128xi1>, vector<8x128xf32>
      %c4_i32 = arith.constant 4 : i32
      %203 = arith.index_cast %c4_i32 : i32 to index
      %c0_64 = arith.constant 0 : index
      %c0_65 = arith.constant 0 : index
      %204 = vector.load %arg11[%203, %c0_64, %c0_65] : memref<8x8x384xf32, #tpu.memory_space<vmem>>, vector<1x8x384xf32>
      %205 = vector.shape_cast %204 : vector<1x8x384xf32> to vector<8x384xf32>
      %206 = arith.truncf %202 : vector<8x128xf32> to vector<8x128xbf16>
      %cst_66 = arith.constant dense<0.000000e+00> : vector<8x384xf32>
      %207 = tpu.matmul %206, %14, %cst_66 {dimension_numbers = #tpu.dot_dimension_numbers<[1], [0], [0], [1], [0, 0, 1, 1], [], []>} : vector<8x128xbf16>, vector<128x384xbf16>, vector<8x384xf32> -> vector<8x384xf32>
      %208 = vector.extract_strided_slice %205 {offsets = [0, 0], sizes = [8, 128], strides = [1, 1]} : vector<8x384xf32> to vector<8x128xf32>
      %209 = vector.extract_strided_slice %207 {offsets = [0, 0], sizes = [8, 128], strides = [1, 1]} : vector<8x384xf32> to vector<8x128xf32>
      %210 = arith.addf %208, %209 : vector<8x128xf32>
      %211 = arith.negf %210 : vector<8x128xf32>
      %212 = math.exp %211 : vector<8x128xf32>
      %cst_67 = arith.constant 1.000000e+00 : f32
      %213 = vector.broadcast %cst_67 : f32 to vector<8x128xf32>
      %214 = arith.addf %213, %212 : vector<8x128xf32>
      %215 = arith.divf %213, %214 : vector<8x128xf32>
      %216 = vector.extract_strided_slice %205 {offsets = [0, 128], sizes = [8, 128], strides = [1, 1]} : vector<8x384xf32> to vector<8x128xf32>
      %217 = vector.extract_strided_slice %207 {offsets = [0, 128], sizes = [8, 128], strides = [1, 1]} : vector<8x384xf32> to vector<8x128xf32>
      %218 = arith.addf %216, %217 : vector<8x128xf32>
      %219 = arith.negf %218 : vector<8x128xf32>
      %220 = math.exp %219 : vector<8x128xf32>
      %cst_68 = arith.constant 1.000000e+00 : f32
      %221 = vector.broadcast %cst_68 : f32 to vector<8x128xf32>
      %222 = arith.addf %221, %220 : vector<8x128xf32>
      %223 = arith.divf %221, %222 : vector<8x128xf32>
      %224 = vector.extract_strided_slice %205 {offsets = [0, 256], sizes = [8, 128], strides = [1, 1]} : vector<8x384xf32> to vector<8x128xf32>
      %225 = vector.extract_strided_slice %207 {offsets = [0, 256], sizes = [8, 128], strides = [1, 1]} : vector<8x384xf32> to vector<8x128xf32>
      %226 = arith.addf %225, %17 : vector<8x128xf32>
      %227 = arith.mulf %215, %226 : vector<8x128xf32>
      %228 = arith.addf %224, %227 : vector<8x128xf32>
      %229 = math.tanh %228 : vector<8x128xf32>
      %cst_69 = arith.constant 1.000000e+00 : f32
      %230 = vector.broadcast %cst_69 : f32 to vector<8x128xf32>
      %231 = arith.subf %230, %223 : vector<8x128xf32>
      %232 = arith.mulf %231, %229 : vector<8x128xf32>
      %233 = arith.mulf %223, %202 : vector<8x128xf32>
      %234 = arith.addf %232, %233 : vector<8x128xf32>
      %c8_i32_70 = arith.constant 8 : i32
      %235 = arith.muli %arg0, %c8_i32_70 : i32
      %236 = arith.addi %235, %c4_i32 : i32
      %237 = vector.broadcast %236 : i32 to vector<8x128xi32>
      %238 = arith.cmpi sgt, %20, %237 : vector<8x128xi32>
      %cst_71 = arith.constant 0.000000e+00 : f32
      %239 = vector.broadcast %cst_71 : f32 to vector<8x128xf32>
      %240 = arith.select %238, %234, %239 : vector<8x128xi1>, vector<8x128xf32>
      %241 = arith.index_cast %c4_i32 : i32 to index
      %c0_72 = arith.constant 0 : index
      %c0_73 = arith.constant 0 : index
      %242 = vector.load %arg8[%241, %c0_72, %c0_73] : memref<8x8x128xf32, #tpu.memory_space<vmem>>, vector<1x8x128xf32>
      %243 = vector.shape_cast %242 : vector<1x8x128xf32> to vector<8x128xf32>
      %244 = vector.shape_cast %240 : vector<8x128xf32> to vector<1x8x128xf32>
      tpu.vector_store %arg8[%241, %c0_72, %c0_73], %244 {strides = array<i32>} : memref<8x8x128xf32, #tpu.memory_space<vmem>>, vector<1x8x128xf32>,
      %245 = arith.select %238, %234, %202 : vector<8x128xi1>, vector<8x128xf32>
      %c5_i32 = arith.constant 5 : i32
      %246 = arith.index_cast %c5_i32 : i32 to index
      %c0_74 = arith.constant 0 : index
      %c0_75 = arith.constant 0 : index
      %247 = vector.load %arg11[%246, %c0_74, %c0_75] : memref<8x8x384xf32, #tpu.memory_space<vmem>>, vector<1x8x384xf32>
      %248 = vector.shape_cast %247 : vector<1x8x384xf32> to vector<8x384xf32>
      %249 = arith.truncf %245 : vector<8x128xf32> to vector<8x128xbf16>
      %cst_76 = arith.constant dense<0.000000e+00> : vector<8x384xf32>
      %250 = tpu.matmul %249, %14, %cst_76 {dimension_numbers = #tpu.dot_dimension_numbers<[1], [0], [0], [1], [0, 0, 1, 1], [], []>} : vector<8x128xbf16>, vector<128x384xbf16>, vector<8x384xf32> -> vector<8x384xf32>
      %251 = vector.extract_strided_slice %248 {offsets = [0, 0], sizes = [8, 128], strides = [1, 1]} : vector<8x384xf32> to vector<8x128xf32>
      %252 = vector.extract_strided_slice %250 {offsets = [0, 0], sizes = [8, 128], strides = [1, 1]} : vector<8x384xf32> to vector<8x128xf32>
      %253 = arith.addf %251, %252 : vector<8x128xf32>
      %254 = arith.negf %253 : vector<8x128xf32>
      %255 = math.exp %254 : vector<8x128xf32>
      %cst_77 = arith.constant 1.000000e+00 : f32
      %256 = vector.broadcast %cst_77 : f32 to vector<8x128xf32>
      %257 = arith.addf %256, %255 : vector<8x128xf32>
      %258 = arith.divf %256, %257 : vector<8x128xf32>
      %259 = vector.extract_strided_slice %248 {offsets = [0, 128], sizes = [8, 128], strides = [1, 1]} : vector<8x384xf32> to vector<8x128xf32>
      %260 = vector.extract_strided_slice %250 {offsets = [0, 128], sizes = [8, 128], strides = [1, 1]} : vector<8x384xf32> to vector<8x128xf32>
      %261 = arith.addf %259, %260 : vector<8x128xf32>
      %262 = arith.negf %261 : vector<8x128xf32>
      %263 = math.exp %262 : vector<8x128xf32>
      %cst_78 = arith.constant 1.000000e+00 : f32
      %264 = vector.broadcast %cst_78 : f32 to vector<8x128xf32>
      %265 = arith.addf %264, %263 : vector<8x128xf32>
      %266 = arith.divf %264, %265 : vector<8x128xf32>
      %267 = vector.extract_strided_slice %248 {offsets = [0, 256], sizes = [8, 128], strides = [1, 1]} : vector<8x384xf32> to vector<8x128xf32>
      %268 = vector.extract_strided_slice %250 {offsets = [0, 256], sizes = [8, 128], strides = [1, 1]} : vector<8x384xf32> to vector<8x128xf32>
      %269 = arith.addf %268, %17 : vector<8x128xf32>
      %270 = arith.mulf %258, %269 : vector<8x128xf32>
      %271 = arith.addf %267, %270 : vector<8x128xf32>
      %272 = math.tanh %271 : vector<8x128xf32>
      %cst_79 = arith.constant 1.000000e+00 : f32
      %273 = vector.broadcast %cst_79 : f32 to vector<8x128xf32>
      %274 = arith.subf %273, %266 : vector<8x128xf32>
      %275 = arith.mulf %274, %272 : vector<8x128xf32>
      %276 = arith.mulf %266, %245 : vector<8x128xf32>
      %277 = arith.addf %275, %276 : vector<8x128xf32>
      %c8_i32_80 = arith.constant 8 : i32
      %278 = arith.muli %arg0, %c8_i32_80 : i32
      %279 = arith.addi %278, %c5_i32 : i32
      %280 = vector.broadcast %279 : i32 to vector<8x128xi32>
      %281 = arith.cmpi sgt, %20, %280 : vector<8x128xi32>
      %cst_81 = arith.constant 0.000000e+00 : f32
      %282 = vector.broadcast %cst_81 : f32 to vector<8x128xf32>
      %283 = arith.select %281, %277, %282 : vector<8x128xi1>, vector<8x128xf32>
      %284 = arith.index_cast %c5_i32 : i32 to index
      %c0_82 = arith.constant 0 : index
      %c0_83 = arith.constant 0 : index
      %285 = vector.load %arg8[%284, %c0_82, %c0_83] : memref<8x8x128xf32, #tpu.memory_space<vmem>>, vector<1x8x128xf32>
      %286 = vector.shape_cast %285 : vector<1x8x128xf32> to vector<8x128xf32>
      %287 = vector.shape_cast %283 : vector<8x128xf32> to vector<1x8x128xf32>
      tpu.vector_store %arg8[%284, %c0_82, %c0_83], %287 {strides = array<i32>} : memref<8x8x128xf32, #tpu.memory_space<vmem>>, vector<1x8x128xf32>,
      %288 = arith.select %281, %277, %245 : vector<8x128xi1>, vector<8x128xf32>
      %c6_i32 = arith.constant 6 : i32
      %289 = arith.index_cast %c6_i32 : i32 to index
      %c0_84 = arith.constant 0 : index
      %c0_85 = arith.constant 0 : index
      %290 = vector.load %arg11[%289, %c0_84, %c0_85] : memref<8x8x384xf32, #tpu.memory_space<vmem>>, vector<1x8x384xf32>
      %291 = vector.shape_cast %290 : vector<1x8x384xf32> to vector<8x384xf32>
      %292 = arith.truncf %288 : vector<8x128xf32> to vector<8x128xbf16>
      %cst_86 = arith.constant dense<0.000000e+00> : vector<8x384xf32>
      %293 = tpu.matmul %292, %14, %cst_86 {dimension_numbers = #tpu.dot_dimension_numbers<[1], [0], [0], [1], [0, 0, 1, 1], [], []>} : vector<8x128xbf16>, vector<128x384xbf16>, vector<8x384xf32> -> vector<8x384xf32>
      %294 = vector.extract_strided_slice %291 {offsets = [0, 0], sizes = [8, 128], strides = [1, 1]} : vector<8x384xf32> to vector<8x128xf32>
      %295 = vector.extract_strided_slice %293 {offsets = [0, 0], sizes = [8, 128], strides = [1, 1]} : vector<8x384xf32> to vector<8x128xf32>
      %296 = arith.addf %294, %295 : vector<8x128xf32>
      %297 = arith.negf %296 : vector<8x128xf32>
      %298 = math.exp %297 : vector<8x128xf32>
      %cst_87 = arith.constant 1.000000e+00 : f32
      %299 = vector.broadcast %cst_87 : f32 to vector<8x128xf32>
      %300 = arith.addf %299, %298 : vector<8x128xf32>
      %301 = arith.divf %299, %300 : vector<8x128xf32>
      %302 = vector.extract_strided_slice %291 {offsets = [0, 128], sizes = [8, 128], strides = [1, 1]} : vector<8x384xf32> to vector<8x128xf32>
      %303 = vector.extract_strided_slice %293 {offsets = [0, 128], sizes = [8, 128], strides = [1, 1]} : vector<8x384xf32> to vector<8x128xf32>
      %304 = arith.addf %302, %303 : vector<8x128xf32>
      %305 = arith.negf %304 : vector<8x128xf32>
      %306 = math.exp %305 : vector<8x128xf32>
      %cst_88 = arith.constant 1.000000e+00 : f32
      %307 = vector.broadcast %cst_88 : f32 to vector<8x128xf32>
      %308 = arith.addf %307, %306 : vector<8x128xf32>
      %309 = arith.divf %307, %308 : vector<8x128xf32>
      %310 = vector.extract_strided_slice %291 {offsets = [0, 256], sizes = [8, 128], strides = [1, 1]} : vector<8x384xf32> to vector<8x128xf32>
      %311 = vector.extract_strided_slice %293 {offsets = [0, 256], sizes = [8, 128], strides = [1, 1]} : vector<8x384xf32> to vector<8x128xf32>
      %312 = arith.addf %311, %17 : vector<8x128xf32>
      %313 = arith.mulf %301, %312 : vector<8x128xf32>
      %314 = arith.addf %310, %313 : vector<8x128xf32>
      %315 = math.tanh %314 : vector<8x128xf32>
      %cst_89 = arith.constant 1.000000e+00 : f32
      %316 = vector.broadcast %cst_89 : f32 to vector<8x128xf32>
      %317 = arith.subf %316, %309 : vector<8x128xf32>
      %318 = arith.mulf %317, %315 : vector<8x128xf32>
      %319 = arith.mulf %309, %288 : vector<8x128xf32>
      %320 = arith.addf %318, %319 : vector<8x128xf32>
      %c8_i32_90 = arith.constant 8 : i32
      %321 = arith.muli %arg0, %c8_i32_90 : i32
      %322 = arith.addi %321, %c6_i32 : i32
      %323 = vector.broadcast %322 : i32 to vector<8x128xi32>
      %324 = arith.cmpi sgt, %20, %323 : vector<8x128xi32>
      %cst_91 = arith.constant 0.000000e+00 : f32
      %325 = vector.broadcast %cst_91 : f32 to vector<8x128xf32>
      %326 = arith.select %324, %320, %325 : vector<8x128xi1>, vector<8x128xf32>
      %327 = arith.index_cast %c6_i32 : i32 to index
      %c0_92 = arith.constant 0 : index
      %c0_93 = arith.constant 0 : index
      %328 = vector.load %arg8[%327, %c0_92, %c0_93] : memref<8x8x128xf32, #tpu.memory_space<vmem>>, vector<1x8x128xf32>
      %329 = vector.shape_cast %328 : vector<1x8x128xf32> to vector<8x128xf32>
      %330 = vector.shape_cast %326 : vector<8x128xf32> to vector<1x8x128xf32>
      tpu.vector_store %arg8[%327, %c0_92, %c0_93], %330 {strides = array<i32>} : memref<8x8x128xf32, #tpu.memory_space<vmem>>, vector<1x8x128xf32>,
      %331 = arith.select %324, %320, %288 : vector<8x128xi1>, vector<8x128xf32>
      %c7_i32 = arith.constant 7 : i32
      %332 = arith.index_cast %c7_i32 : i32 to index
      %c0_94 = arith.constant 0 : index
      %c0_95 = arith.constant 0 : index
      %333 = vector.load %arg11[%332, %c0_94, %c0_95] : memref<8x8x384xf32, #tpu.memory_space<vmem>>, vector<1x8x384xf32>
      %334 = vector.shape_cast %333 : vector<1x8x384xf32> to vector<8x384xf32>
      %335 = arith.truncf %331 : vector<8x128xf32> to vector<8x128xbf16>
      %cst_96 = arith.constant dense<0.000000e+00> : vector<8x384xf32>
      %336 = tpu.matmul %335, %14, %cst_96 {dimension_numbers = #tpu.dot_dimension_numbers<[1], [0], [0], [1], [0, 0, 1, 1], [], []>} : vector<8x128xbf16>, vector<128x384xbf16>, vector<8x384xf32> -> vector<8x384xf32>
      %337 = vector.extract_strided_slice %334 {offsets = [0, 0], sizes = [8, 128], strides = [1, 1]} : vector<8x384xf32> to vector<8x128xf32>
      %338 = vector.extract_strided_slice %336 {offsets = [0, 0], sizes = [8, 128], strides = [1, 1]} : vector<8x384xf32> to vector<8x128xf32>
      %339 = arith.addf %337, %338 : vector<8x128xf32>
      %340 = arith.negf %339 : vector<8x128xf32>
      %341 = math.exp %340 : vector<8x128xf32>
      %cst_97 = arith.constant 1.000000e+00 : f32
      %342 = vector.broadcast %cst_97 : f32 to vector<8x128xf32>
      %343 = arith.addf %342, %341 : vector<8x128xf32>
      %344 = arith.divf %342, %343 : vector<8x128xf32>
      %345 = vector.extract_strided_slice %334 {offsets = [0, 128], sizes = [8, 128], strides = [1, 1]} : vector<8x384xf32> to vector<8x128xf32>
      %346 = vector.extract_strided_slice %336 {offsets = [0, 128], sizes = [8, 128], strides = [1, 1]} : vector<8x384xf32> to vector<8x128xf32>
      %347 = arith.addf %345, %346 : vector<8x128xf32>
      %348 = arith.negf %347 : vector<8x128xf32>
      %349 = math.exp %348 : vector<8x128xf32>
      %cst_98 = arith.constant 1.000000e+00 : f32
      %350 = vector.broadcast %cst_98 : f32 to vector<8x128xf32>
      %351 = arith.addf %350, %349 : vector<8x128xf32>
      %352 = arith.divf %350, %351 : vector<8x128xf32>
      %353 = vector.extract_strided_slice %334 {offsets = [0, 256], sizes = [8, 128], strides = [1, 1]} : vector<8x384xf32> to vector<8x128xf32>
      %354 = vector.extract_strided_slice %336 {offsets = [0, 256], sizes = [8, 128], strides = [1, 1]} : vector<8x384xf32> to vector<8x128xf32>
      %355 = arith.addf %354, %17 : vector<8x128xf32>
      %356 = arith.mulf %344, %355 : vector<8x128xf32>
      %357 = arith.addf %353, %356 : vector<8x128xf32>
      %358 = math.tanh %357 : vector<8x128xf32>
      %cst_99 = arith.constant 1.000000e+00 : f32
      %359 = vector.broadcast %cst_99 : f32 to vector<8x128xf32>
      %360 = arith.subf %359, %352 : vector<8x128xf32>
      %361 = arith.mulf %360, %358 : vector<8x128xf32>
      %362 = arith.mulf %352, %331 : vector<8x128xf32>
      %363 = arith.addf %361, %362 : vector<8x128xf32>
      %c8_i32_100 = arith.constant 8 : i32
      %364 = arith.muli %arg0, %c8_i32_100 : i32
      %365 = arith.addi %364, %c7_i32 : i32
      %366 = vector.broadcast %365 : i32 to vector<8x128xi32>
      %367 = arith.cmpi sgt, %20, %366 : vector<8x128xi32>
      %cst_101 = arith.constant 0.000000e+00 : f32
      %368 = vector.broadcast %cst_101 : f32 to vector<8x128xf32>
      %369 = arith.select %367, %363, %368 : vector<8x128xi1>, vector<8x128xf32>
      %370 = arith.index_cast %c7_i32 : i32 to index
      %c0_102 = arith.constant 0 : index
      %c0_103 = arith.constant 0 : index
      %371 = vector.load %arg8[%370, %c0_102, %c0_103] : memref<8x8x128xf32, #tpu.memory_space<vmem>>, vector<1x8x128xf32>
      %372 = vector.shape_cast %371 : vector<1x8x128xf32> to vector<8x128xf32>
      %373 = vector.shape_cast %369 : vector<8x128xf32> to vector<1x8x128xf32>
      tpu.vector_store %arg8[%370, %c0_102, %c0_103], %373 {strides = array<i32>} : memref<8x8x128xf32, #tpu.memory_space<vmem>>, vector<1x8x128xf32>,
      %374 = arith.select %367, %363, %331 : vector<8x128xi1>, vector<8x128xf32>
      %c8_i32_104 = arith.constant 8 : i32
      %c0_105 = arith.constant 0 : index
      %c0_106 = arith.constant 0 : index
      %375 = vector.load %arg10[%c0_105, %c0_106] : memref<8x128xf32, #tpu.memory_space<vmem>>, vector<8x128xf32>
      tpu.vector_store %arg10[%c0_105, %c0_106], %374 {strides = array<i32>} : memref<8x128xf32, #tpu.memory_space<vmem>>, vector<8x128xf32>,
    } else {
    }
    %c0_i32_3 = arith.constant 0 : i32
    %11 = arith.cmpi eq, %arg0, %c0_i32_3 : i32
    %12 = arith.extui %11 : i1 to i32
    %c0_i32_4 = arith.constant 0 : i32
    %13 = arith.cmpi ne, %12, %c0_i32_4 : i32
    scf.if %13 {
      %c0_5 = arith.constant 0 : index
      %c0_6 = arith.constant 0 : index
      %14 = vector.load %arg10[%c0_5, %c0_6] : memref<8x128xf32, #tpu.memory_space<vmem>>, vector<8x128xf32>
      %c0_7 = arith.constant 0 : index
      %c0_8 = arith.constant 0 : index
      %c0_9 = arith.constant 0 : index
      %15 = vector.load %arg9[%c0_7, %c0_8, %c0_9] : memref<1x8x128xf32, #tpu.memory_space<vmem>>, vector<1x8x128xf32>
      %16 = vector.shape_cast %15 : vector<1x8x128xf32> to vector<8x128xf32>
      %17 = vector.shape_cast %14 : vector<8x128xf32> to vector<1x8x128xf32>
      tpu.vector_store %arg9[%c0_7, %c0_8, %c0_9], %17 {strides = array<i32>} : memref<1x8x128xf32, #tpu.memory_space<vmem>>, vector<1x8x128xf32>,
    } else {
    }
    return
  }
  func.func @transform_0(%arg0: i32, %arg1: memref<1xi32, #tpu.memory_space<smem>>) -> (i32, i32, i32) {
    %c0_i32 = arith.constant 0 : i32
    %c0_i32_0 = arith.constant 0 : i32
    %c0_i32_1 = arith.constant 0 : i32
    return %arg0, %c0_i32, %c0_i32_0 : i32, i32, i32
  }
  func.func @transform_1(%arg0: i32, %arg1: memref<1xi32, #tpu.memory_space<smem>>) -> (i32, i32) {
    %c0_i32 = arith.constant 0 : i32
    %c0_i32_0 = arith.constant 0 : i32
    %c0_i32_1 = arith.constant 0 : i32
    return %c0_i32, %c0_i32_0 : i32, i32
  }
  func.func @transform_2(%arg0: i32, %arg1: memref<1xi32, #tpu.memory_space<smem>>) -> (i32, i32) {
    %c0_i32 = arith.constant 0 : i32
    %c0_i32_0 = arith.constant 0 : i32
    %c0_i32_1 = arith.constant 0 : i32
    return %c0_i32, %c0_i32_0 : i32, i32
  }
  func.func @transform_3(%arg0: i32, %arg1: memref<1xi32, #tpu.memory_space<smem>>) -> (i32, i32) {
    %c0_i32 = arith.constant 0 : i32
    %c0_i32_0 = arith.constant 0 : i32
    %c0_i32_1 = arith.constant 0 : i32
    return %c0_i32, %c0_i32_0 : i32, i32
  }
  func.func @transform_4(%arg0: i32, %arg1: memref<1xi32, #tpu.memory_space<smem>>) -> (i32, i32) {
    %c0_i32 = arith.constant 0 : i32
    %c0_i32_0 = arith.constant 0 : i32
    %c0_i32_1 = arith.constant 0 : i32
    return %c0_i32, %c0_i32_0 : i32, i32
  }
  func.func @transform_5(%arg0: i32, %arg1: memref<1xi32, #tpu.memory_space<smem>>) -> (i32, i32) {
    %c0_i32 = arith.constant 0 : i32
    %c0_i32_0 = arith.constant 0 : i32
    %c0_i32_1 = arith.constant 0 : i32
    return %c0_i32, %c0_i32_0 : i32, i32
  }
  func.func @transform_6(%arg0: i32, %arg1: memref<1xi32, #tpu.memory_space<smem>>) -> (i32, i32, i32) {
    %c0_i32 = arith.constant 0 : i32
    %c0_i32_0 = arith.constant 0 : i32
    %c0_i32_1 = arith.constant 0 : i32
    return %arg0, %c0_i32, %c0_i32_0 : i32, i32, i32
  }
  func.func @transform_7(%arg0: i32, %arg1: memref<1xi32, #tpu.memory_space<smem>>) -> (i32, i32, i32) {
    %c0_i32 = arith.constant 0 : i32
    %c0_i32_0 = arith.constant 0 : i32
    %c0_i32_1 = arith.constant 0 : i32
    %c0_i32_2 = arith.constant 0 : i32
    return %c0_i32, %c0_i32_0, %c0_i32_1 : i32, i32, i32
  }
}

</mosaic_0001>

<llo_original>
// kernel: plain_encoder_forward.1
$region0: #{plain_encoder_forward.1}
  #allocation0 [shape = 'u32[]', space=smem, size = 0x4, offset = 0x4, fixed_abs, tag = 'smem constant byte address 0x4 - core index']
  #allocation1 [shape = 'u32[144,128]{1,0:T(1,128)}', space=vmem, size = 0x12000, scoped, tag = 'internal scratch']
  #allocation2 [shape = 'f32[8,128]{1,0:T(8,128)}', space=vmem, size = 0x1000, scoped, tag = 'scratch operand']
  #allocation3 [shape = 'f32[8,8,384]{2,1,0:T(8,128)}', space=vmem, size = 0x18000, scoped, tag = 'scratch operand']
  #allocation4 [shape = 's32[1]{0}', space=sflag, size = 0x4, scoped, tag = 'scoped memory for plain_encoder_forward.1']
  #allocation5 [shape = 's32[1]{0:T(128)S(6)}', space=smem, size = 0x200, scoped, tag = 'prefetched SMEM operand 0']
  %s0 = inlined_call_operand.<no memory space> [shape: s32[1], index: 0, kind: input, shape index: {}]
  %s1 = inlined_call_operand.vmem [shape: bf16[8,8,128], index: 1, kind: input, shape index: {}]
  %s2 = inlined_call_operand.vmem [shape: s32[8,1], index: 2, kind: input, shape index: {}]
  %s3 = inlined_call_operand.vmem [shape: bf16[128,384], index: 3, kind: input, shape index: {}]
  %s4 = inlined_call_operand.vmem [shape: bf16[128,384], index: 4, kind: input, shape index: {}]
  %s5 = inlined_call_operand.vmem [shape: f32[1,384], index: 5, kind: input, shape index: {}]
  %s6 = inlined_call_operand.vmem [shape: f32[1,128], index: 6, kind: input, shape index: {}]
  %s7 = inlined_call_operand.vmem [shape: f32[8,8,128], index: 7, kind: output, shape index: {0}]
  %s8 = inlined_call_operand.vmem [shape: f32[1,8,128], index: 8, kind: output, shape index: {1}]
  %9 = xla_tuple %s7, %s8
  %s10 = sld [smem:[#allocation0]]
  $region58: #{plain_encoder_forward.1} parent=0
    _
  %s12 = ssub.s32 1, %s10
  %s13 = scalar_select 0, %s12, %s10
  %14 = sst [smem:[#allocation5]] %s0
  // Predicated region
  $region2: #{plain_encoder_forward.1} parent=0 // pred_check
    _
  $region3: #{plain_encoder_forward.1} parent=0 // pred_check_branch
    %16 = sbr.rel (0) target = $region5
  $region4: #{plain_encoder_forward.1} parent=0 // pred_region
    _
  $region5: #{plain_encoder_forward.1} parent=0 // pred_fallthru
    _
  // Predicated region
  $region6: #{plain_encoder_forward.1} parent=0 // pred_check
    _
  $region7: #{plain_encoder_forward.1} parent=0 // pred_check_branch
    %18 = sbr.rel (0) target = $region9
  $region8: #{plain_encoder_forward.1} parent=0 // pred_region
    _
  $region9: #{plain_encoder_forward.1} parent=0 // pred_fallthru
    _
  // Predicated region
  $region10: #{plain_encoder_forward.1} parent=0 // pred_check
    _
  $region11: #{plain_encoder_forward.1} parent=0 // pred_check_branch
    %20 = sbr.rel (0) target = $region13
  $region12: #{plain_encoder_forward.1} parent=0 // pred_region
    _
  $region13: #{plain_encoder_forward.1} parent=0 // pred_fallthru
    _
  // Predicated region
  $region14: #{plain_encoder_forward.1} parent=0 // pred_check
    _
  $region15: #{plain_encoder_forward.1} parent=0 // pred_check_branch
    %22 = sbr.rel (0) target = $region17
  $region16: #{plain_encoder_forward.1} parent=0 // pred_region
    _
  $region17: #{plain_encoder_forward.1} parent=0 // pred_fallthru
    _
  // Predicated region
  $region18: #{plain_encoder_forward.1} parent=0 // pred_check
    _
  $region19: #{plain_encoder_forward.1} parent=0 // pred_check_branch
    %24 = sbr.rel (0) target = $region21
  $region20: #{plain_encoder_forward.1} parent=0 // pred_region
    _
  $region21: #{plain_encoder_forward.1} parent=0 // pred_fallthru
    _
  // Predicated region
  $region22: #{plain_encoder_forward.1} parent=0 // pred_check
    _
  $region23: #{plain_encoder_forward.1} parent=0 // pred_check_branch
    %26 = sbr.rel (0) target = $region25
  $region24: #{plain_encoder_forward.1} parent=0 // pred_region
    _
  $region25: #{plain_encoder_forward.1} parent=0 // pred_fallthru
    _
  %p28 = scmp.eq.s32.totalorder 0, 0
  // Predicated region
  $region26: #{plain_encoder_forward.1} parent=0 // pred_check
    %p29 = pneg %p28
  $region27: #{plain_encoder_forward.1} parent=0 // pred_check_branch
    %31 = sbr.rel (%p29) target = $region29
  $region28: #{plain_encoder_forward.1} parent=0 // pred_region
    %32 = vst [vmem:[#allocation2] sm:$0xff] 0.0
  $region29: #{plain_encoder_forward.1} parent=0 // pred_fallthru
    _
  %s33 = smul.u32 0, 8
  %s34 = sld [smem:[#allocation5]]
  %p35 = scmp.lt.s32.totalorder %s33, %s34
  %p36 = scmp.ge.s32.totalorder %s33, %s34
  // Predicated region
  $region30: #{plain_encoder_forward.1} parent=0 // pred_check
    %p37 = pneg %p36
  $region31: #{plain_encoder_forward.1} parent=0 // pred_check_branch
    %39 = sbr.rel (%p37) target = $region33
  $region32: #{plain_encoder_forward.1} parent=0 // pred_region
    %40 = vst [vmem:[%s7] sm:$0xff] 0.0
    %41 = vst [vmem:[%s7 + $0x8] sm:$0xff] 0.0
    %42 = vst [vmem:[%s7 + $0x10] sm:$0xff] 0.0
    %43 = vst [vmem:[%s7 + $0x18] sm:$0xff] 0.0
    %44 = vst [vmem:[%s7 + $0x20] sm:$0xff] 0.0
    %45 = vst [vmem:[%s7 + $0x28] sm:$0xff] 0.0
    %46 = vst [vmem:[%s7 + $0x30] sm:$0xff] 0.0
    %47 = vst [vmem:[%s7 + $0x38] sm:$0xff] 0.0
  $region33: #{plain_encoder_forward.1} parent=0 // pred_fallthru
    _
  // Predicated region
  $region34: #{plain_encoder_forward.1} parent=0 // pred_check
    %p48 = pneg %p35
  $region35: #{plain_encoder_forward.1} parent=0 // pred_check_branch
    %50 = sbr.rel (%p48) target = $region37
  $region36: #{plain_encoder_forward.1} parent=0 // pred_region
    %v51 = vld [vmem:[%s4] sm:$0xff]
    %v52 = vld [vmem:[%s4 + $0x8] sm:$0xf]
    %v53 = vld [vmem:[%s4 + $0xc] sm:$0xff]
    %v54 = vld [vmem:[%s4 + $0x14] sm:$0xf]
    %v55 = vld [vmem:[%s4 + $0x18] sm:$0xff]
    %v56 = vld [vmem:[%s4 + $0x20] sm:$0xf]
    %v57 = vld [vmem:[%s4 + $0x24] sm:$0xff]
    %v58 = vld [vmem:[%s4 + $0x2c] sm:$0xf]
    %v59 = vld [vmem:[%s4 + $0x30] sm:$0xff]
    %v60 = vld [vmem:[%s4 + $0x38] sm:$0xf]
    %v61 = vld [vmem:[%s4 + $0x3c] sm:$0xff]
    %v62 = vld [vmem:[%s4 + $0x44] sm:$0xf]
    %v63 = vld [vmem:[%s4 + $0x48] sm:$0xff]
    %v64 = vld [vmem:[%s4 + $0x50] sm:$0xf]
    %v65 = vld [vmem:[%s4 + $0x54] sm:$0xff]
    %v66 = vld [vmem:[%s4 + $0x5c] sm:$0xf]
    %v67 = vld [vmem:[%s4 + $0x60] sm:$0xff]
    %v68 = vld [vmem:[%s4 + $0x68] sm:$0xf]
    %v69 = vld [vmem:[%s4 + $0x6c] sm:$0xff]
    %v70 = vld [vmem:[%s4 + $0x74] sm:$0xf]
    %v71 = vld [vmem:[%s4 + $0x78] sm:$0xff]
    %v72 = vld [vmem:[%s4 + $0x80] sm:$0xf]
    %v73 = vld [vmem:[%s4 + $0x84] sm:$0xff]
    %v74 = vld [vmem:[%s4 + $0x8c] sm:$0xf]
    %v75 = vld [vmem:[%s4 + $0x90] sm:$0xff]
    %v76 = vld [vmem:[%s4 + $0x98] sm:$0xf]
    %v77 = vld [vmem:[%s4 + $0x9c] sm:$0xff]
    %v78 = vld [vmem:[%s4 + $0xa4] sm:$0xf]
    %v79 = vld [vmem:[%s4 + $0xa8] sm:$0xff]
    %v80 = vld [vmem:[%s4 + $0xb0] sm:$0xf]
    %v81 = vld [vmem:[%s4 + $0xb4] sm:$0xff]
    %v82 = vld [vmem:[%s4 + $0xbc] sm:$0xf]
    %v83 = vld [vmem:[%s6] sm:$0x1]
    %v85 = vlaneseq
    %v86 = vshrl.u32 %v85, 7
    %v87 = vsub.s32 0, %v86
    %v88 = vrot.slane %v83, %v87
    %v90 = vld [vmem:[%s2] sm:$0xff]
    %91 = vset.pattern.permute.xlu0 0
    %92 = vperm.xlu0 %91, %v90
    %v93 = vpop.permute.xlu0 %92
    %v94 = vld [vmem:[%s1] sm:$0xf]
    %v95 = vld [vmem:[%s1 + $0x4] sm:$0xf]
    %v96 = vld [vmem:[%s1 + $0x8] sm:$0xf]
    %v97 = vld [vmem:[%s1 + $0xc] sm:$0xf]
    %v98 = vld [vmem:[%s1 + $0x10] sm:$0xf]
    %v99 = vld [vmem:[%s1 + $0x14] sm:$0xf]
    %v100 = vld [vmem:[%s1 + $0x18] sm:$0xf]
    %v101 = vld [vmem:[%s1 + $0x1c] sm:$0xf]
    %v102 = vld [vmem:[%s3] sm:$0xff]
    %v103 = vld [vmem:[%s3 + $0x8] sm:$0xf]
    %v104 = vld [vmem:[%s3 + $0xc] sm:$0xff]
    %v105 = vld [vmem:[%s3 + $0x14] sm:$0xf]
    %v106 = vld [vmem:[%s3 + $0x18] sm:$0xff]
    %v107 = vld [vmem:[%s3 + $0x20] sm:$0xf]
    %v108 = vld [vmem:[%s3 + $0x24] sm:$0xff]
    %v109 = vld [vmem:[%s3 + $0x2c] sm:$0xf]
    %v110 = vld [vmem:[%s3 + $0x30] sm:$0xff]
    %v111 = vld [vmem:[%s3 + $0x38] sm:$0xf]
    %v112 = vld [vmem:[%s3 + $0x3c] sm:$0xff]
    %v113 = vld [vmem:[%s3 + $0x44] sm:$0xf]
    %v114 = vld [vmem:[%s3 + $0x48] sm:$0xff]
    %v115 = vld [vmem:[%s3 + $0x50] sm:$0xf]
    %v116 = vld [vmem:[%s3 + $0x54] sm:$0xff]
    %v117 = vld [vmem:[%s3 + $0x5c] sm:$0xf]
    %v118 = vld [vmem:[%s3 + $0x60] sm:$0xff]
    %v119 = vld [vmem:[%s3 + $0x68] sm:$0xf]
    %v120 = vld [vmem:[%s3 + $0x6c] sm:$0xff]
    %v121 = vld [vmem:[%s3 + $0x74] sm:$0xf]
    %v122 = vld [vmem:[%s3 + $0x78] sm:$0xff]
    %v123 = vld [vmem:[%s3 + $0x80] sm:$0xf]
    %v124 = vld [vmem:[%s3 + $0x84] sm:$0xff]
    %v125 = vld [vmem:[%s3 + $0x8c] sm:$0xf]
    %v126 = vld [vmem:[%s3 + $0x90] sm:$0xff]
    %v127 = vld [vmem:[%s3 + $0x98] sm:$0xf]
    %v128 = vld [vmem:[%s3 + $0x9c] sm:$0xff]
    %v129 = vld [vmem:[%s3 + $0xa4] sm:$0xf]
    %v130 = vld [vmem:[%s3 + $0xa8] sm:$0xff]
    %v131 = vld [vmem:[%s3 + $0xb0] sm:$0xf]
    %v132 = vld [vmem:[%s3 + $0xb4] sm:$0xff]
    %v133 = vld [vmem:[%s3 + $0xbc] sm:$0xf]
    %v134 = vld [vmem:[%s5] sm:$0x7]
    %v136 = vlaneseq
    %v137 = vshrl.u32 %v136, 7
    %v138 = vsub.s32 0, %v137
    %v139 = vrot.slane %v134, %v138
    %v140 = vlaneseq
    %v141 = vshrl.u32 %v140, 7
    %v142 = vsub.s32 1, %v141
    %v143 = vrot.slane %v134, %v142
    %v144 = vlaneseq
    %v145 = vshrl.u32 %v144, 7
    %v146 = vsub.s32 2, %v145
    %v147 = vrot.slane %v134, %v146
    %v159 = vunpack.c.l.b16 %v94
    %v160 = vunpack.c.l.b16 %v95
    %v161 = vunpack.c.l.b16 %v96
    %v162 = vunpack.c.l.b16 %v97
    %v163 = vunpack.c.l.b16 %v98
    %v164 = vunpack.c.l.b16 %v99
    %v165 = vunpack.c.l.b16 %v100
    %v166 = vunpack.c.l.b16 %v101
    %v167 = vpack.c.b16 %v160, %v159
    %v168 = vpack.c.b16 %v162, %v161
    %v169 = vpack.c.b16 %v164, %v163
    %v170 = vpack.c.b16 %v166, %v165
    %v207 = vunpack.c.l.b16 %v102
    %v208 = vunpack.c.h.b16 %v102
    %v209 = vunpack.c.l.b16 %v103
    %v210 = vunpack.c.l.b16 %v104
    %v211 = vunpack.c.h.b16 %v104
    %v212 = vunpack.c.l.b16 %v105
    %v213 = vunpack.c.l.b16 %v106
    %v214 = vunpack.c.h.b16 %v106
    %v215 = vunpack.c.l.b16 %v107
    %v216 = vunpack.c.l.b16 %v108
    %v217 = vunpack.c.h.b16 %v108
    %v218 = vunpack.c.l.b16 %v109
    %v219 = vunpack.c.l.b16 %v110
    %v220 = vunpack.c.h.b16 %v110
    %v221 = vunpack.c.l.b16 %v111
    %v222 = vunpack.c.l.b16 %v112
    %v223 = vunpack.c.h.b16 %v112
    %v224 = vunpack.c.l.b16 %v113
    %v225 = vunpack.c.l.b16 %v114
    %v226 = vunpack.c.h.b16 %v114
    %v227 = vunpack.c.l.b16 %v115
    %v228 = vunpack.c.l.b16 %v116
    %v229 = vunpack.c.h.b16 %v116
    %v230 = vunpack.c.l.b16 %v117
    %v231 = vunpack.c.l.b16 %v118
    %v232 = vunpack.c.h.b16 %v118
    %v233 = vunpack.c.l.b16 %v119
    %v234 = vunpack.c.l.b16 %v120
    %v235 = vunpack.c.h.b16 %v120
    %v236 = vunpack.c.l.b16 %v121
    %v237 = vunpack.c.l.b16 %v122
    %v238 = vunpack.c.h.b16 %v122
    %v239 = vunpack.c.l.b16 %v123
    %v240 = vunpack.c.l.b16 %v124
    %v241 = vunpack.c.h.b16 %v124
    %v242 = vunpack.c.l.b16 %v125
    %v243 = vunpack.c.l.b16 %v126
    %v244 = vunpack.c.h.b16 %v126
    %v245 = vunpack.c.l.b16 %v127
    %v246 = vunpack.c.l.b16 %v128
    %v247 = vunpack.c.h.b16 %v128
    %v248 = vunpack.c.l.b16 %v129
    %v249 = vunpack.c.l.b16 %v130
    %v250 = vunpack.c.h.b16 %v130
    %v251 = vunpack.c.l.b16 %v131
    %v252 = vunpack.c.l.b16 %v132
    %v253 = vunpack.c.h.b16 %v132
    %v254 = vunpack.c.l.b16 %v133
    %v255 = vpack.c.b16 %v210, %v207
    %v256 = vpack.c.b16 %v211, %v208
    %v257 = vpack.c.b16 %v212, %v209
    %v258 = vpack.c.b16 %v216, %v213
    %v259 = vpack.c.b16 %v217, %v214
    %v260 = vpack.c.b16 %v218, %v215
    %v261 = vpack.c.b16 %v222, %v219
    %v262 = vpack.c.b16 %v223, %v220
    %v263 = vpack.c.b16 %v224, %v221
    %v264 = vpack.c.b16 %v228, %v225
    %v265 = vpack.c.b16 %v229, %v226
    %v266 = vpack.c.b16 %v230, %v227
    %v267 = vpack.c.b16 %v234, %v231
    %v268 = vpack.c.b16 %v235, %v232
    %v269 = vpack.c.b16 %v236, %v233
    %v270 = vpack.c.b16 %v240, %v237
    %v271 = vpack.c.b16 %v241, %v238
    %v272 = vpack.c.b16 %v242, %v239
    %v273 = vpack.c.b16 %v246, %v243
    %v274 = vpack.c.b16 %v247, %v244
    %v275 = vpack.c.b16 %v248, %v245
    %v276 = vpack.c.b16 %v252, %v249
    %v277 = vpack.c.b16 %v253, %v250
    %v278 = vpack.c.b16 %v254, %v251
    %303 = vmatprep.subr.bf16.mxu0 %v256
    %304 = vmatpush1.bf16.msra.mxu0 %v255
    %305 = vmatprep.subr.bf16.mxu0 %v259
    %306 = vmatpush1.bf16.msra.mxu0 %v258
    %307 = vmatprep.subr.bf16.mxu0 %v262
    %308 = vmatpush1.bf16.msra.mxu0 %v261
    %309 = vmatprep.subr.bf16.mxu0 %v265
    %310 = vmatpush1.bf16.msra.mxu0 %v264
    %311 = vmatprep.subr.bf16.mxu0 %v268
    %312 = vmatpush1.bf16.msra.mxu0 %v267
    %313 = vmatprep.subr.bf16.mxu0 %v271
    %314 = vmatpush1.bf16.msra.mxu0 %v270
    %315 = vmatprep.subr.bf16.mxu0 %v274
    %316 = vmatpush1.bf16.msra.mxu0 %v273
    %317 = vmatprep.subr.bf16.mxu0 %v277
    %318 = vmatpush1.bf16.msra.mxu0 %v276
    %319 = vmatprep.subr.bf16.mxu0 0
    %320 = vmatpush1.bf16.msra.mxu0 0
    %321 = vmatprep.subr.bf16.mxu0 0
    %322 = vmatpush1.bf16.msra.mxu0 0
    %323 = vmatprep.subr.bf16.mxu0 0
    %324 = vmatpush1.bf16.msra.mxu0 0
    %325 = vmatprep.subr.bf16.mxu0 0
    %326 = vmatpush1.bf16.msra.mxu0 0
    %327 = vmatprep.subr.bf16.mxu0 0
    %328 = vmatpush1.bf16.msra.mxu0 0
    %329 = vmatprep.subr.bf16.mxu0 0
    %330 = vmatpush1.bf16.msra.mxu0 0
    %331 = vmatprep.subr.bf16.mxu0 0
    %332 = vmatpush1.bf16.msra.mxu0 0
    %333 = vmatprep.subr.bf16.mxu0 0
    %334 = vmatpush1.bf16.msra.mxu0 0
    %335 = vmatprep.mubr.bf16.mxu0 0
    %336 = vmatmul.mubr.bf16.gmra.mrb[0].mxu0 %v167
    %v337 = vpop.f32.mrb[0].mxu0
    %v338 = vadd.f32 %v139, %v337
    %v339 = vpop.f32.mrb[0].mxu0
    %v340 = vadd.f32 %v143, %v339
    %v341 = vpop.f32.mrb[0].mxu0
    %v342 = vadd.f32 %v139, %v341
    %v343 = vpop.f32.mrb[0].mxu0
    %v344 = vadd.f32 %v143, %v343
    %345 = vmatprep.mubr.bf16.mxu0 0
    %346 = vmatmul.mubr.bf16.gmra.mrb[0].mxu0 %v168
    %v347 = vpop.f32.mrb[0].mxu0
    %v348 = vadd.f32 %v139, %v347
    %v349 = vpop.f32.mrb[0].mxu0
    %v350 = vadd.f32 %v143, %v349
    %v351 = vpop.f32.mrb[0].mxu0
    %v352 = vadd.f32 %v139, %v351
    %v353 = vpop.f32.mrb[0].mxu0
    %v354 = vadd.f32 %v143, %v353
    %355 = vmatprep.mubr.bf16.mxu0 0
    %356 = vmatmul.mubr.bf16.gmra.mrb[0].mxu0 %v169
    %v357 = vpop.f32.mrb[0].mxu0
    %v358 = vadd.f32 %v139, %v357
    %v359 = vpop.f32.mrb[0].mxu0
    %v360 = vadd.f32 %v143, %v359
    %v361 = vpop.f32.mrb[0].mxu0
    %v362 = vadd.f32 %v139, %v361
    %v363 = vpop.f32.mrb[0].mxu0
    %v364 = vadd.f32 %v143, %v363
    %365 = vmatprep.mubr.bf16.mxu0 0
    %366 = vmatmul.mubr.bf16.gmra.mrb[0].mxu0 %v170
    %v367 = vpop.f32.mrb[0].mxu0
    %v368 = vadd.f32 %v139, %v367
    %v369 = vpop.f32.mrb[0].mxu0
    %v370 = vadd.f32 %v143, %v369
    %v371 = vpop.f32.mrb[0].mxu0
    %v372 = vadd.f32 %v139, %v371
    %v373 = vpop.f32.mrb[0].mxu0
    %v374 = vadd.f32 %v143, %v373
    %375 = vdwg.mxu0
    %376 = vmatprep.subr.bf16.mxu0 0
    %377 = vmatpush1.bf16.msra.mxu0 %v257
    %378 = vmatprep.subr.bf16.mxu0 0
    %379 = vmatpush1.bf16.msra.mxu0 %v260
    %380 = vmatprep.subr.bf16.mxu0 0
    %381 = vmatpush1.bf16.msra.mxu0 %v263
    %382 = vmatprep.subr.bf16.mxu0 0
    %383 = vmatpush1.bf16.msra.mxu0 %v266
    %384 = vmatprep.subr.bf16.mxu0 0
    %385 = vmatpush1.bf16.msra.mxu0 %v269
    %386 = vmatprep.subr.bf16.mxu0 0
    %387 = vmatpush1.bf16.msra.mxu0 %v272
    %388 = vmatprep.subr.bf16.mxu0 0
    %389 = vmatpush1.bf16.msra.mxu0 %v275
    %390 = vmatprep.subr.bf16.mxu0 0
    %391 = vmatpush1.bf16.msra.mxu0 %v278
    %392 = vmatprep.subr.bf16.mxu0 0
    %393 = vmatpush1.bf16.msra.mxu0 0
    %394 = vmatprep.subr.bf16.mxu0 0
    %395 = vmatpush1.bf16.msra.mxu0 0
    %396 = vmatprep.subr.bf16.mxu0 0
    %397 = vmatpush1.bf16.msra.mxu0 0
    %398 = vmatprep.subr.bf16.mxu0 0
    %399 = vmatpush1.bf16.msra.mxu0 0
    %400 = vmatprep.subr.bf16.mxu0 0
    %401 = vmatpush1.bf16.msra.mxu0 0
    %402 = vmatprep.subr.bf16.mxu0 0
    %403 = vmatpush1.bf16.msra.mxu0 0
    %404 = vmatprep.subr.bf16.mxu0 0
    %405 = vmatpush1.bf16.msra.mxu0 0
    %406 = vmatprep.subr.bf16.mxu0 0
    %407 = vmatpush1.bf16.msra.mxu0 0
    %408 = vmatprep.mubr.bf16.mxu0 0
    %409 = vmatmul.mubr.bf16.gmra.mrb[0].mxu0 %v167
    %v410 = vpop.f32.mrb[0].mxu0
    %v411 = vadd.f32 %v147, %v410
    %v412 = vpop.f32.mrb[0].mxu0
    %v413 = vpop.f32.mrb[0].mxu0
    %v414 = vadd.f32 %v147, %v413
    %v415 = vpop.f32.mrb[0].mxu0
    %416 = vmatprep.mubr.bf16.mxu0 0
    %417 = vmatmul.mubr.bf16.gmra.mrb[0].mxu0 %v168
    %v418 = vpop.f32.mrb[0].mxu0
    %v419 = vadd.f32 %v147, %v418
    %v420 = vpop.f32.mrb[0].mxu0
    %v421 = vpop.f32.mrb[0].mxu0
    %v422 = vadd.f32 %v147, %v421
    %v423 = vpop.f32.mrb[0].mxu0
    %424 = vmatprep.mubr.bf16.mxu0 0
    %425 = vmatmul.mubr.bf16.gmra.mrb[0].mxu0 %v169
    %v426 = vpop.f32.mrb[0].mxu0
    %v427 = vadd.f32 %v147, %v426
    %v428 = vpop.f32.mrb[0].mxu0
    %v429 = vpop.f32.mrb[0].mxu0
    %v430 = vadd.f32 %v147, %v429
    %v431 = vpop.f32.mrb[0].mxu0
    %432 = vmatprep.mubr.bf16.mxu0 0
    %433 = vmatmul.mubr.bf16.gmra.mrb[0].mxu0 %v170
    %v434 = vpop.f32.mrb[0].mxu0
    %v435 = vadd.f32 %v147, %v434
    %v436 = vpop.f32.mrb[0].mxu0
    %v437 = vpop.f32.mrb[0].mxu0
    %v438 = vadd.f32 %v147, %v437
    %v439 = vpop.f32.mrb[0].mxu0
    %440 = vdwg.mxu0
    %441 = vst [vmem:[#allocation3] sm:$0xff] %v338
    %442 = vst [vmem:[#allocation3 + $0x8] sm:$0xff] %v340
    %443 = vst [vmem:[#allocation3 + $0x10] sm:$0xff] %v411
    %444 = vst [vmem:[#allocation3 + $0x18] sm:$0xff] %v342
    %445 = vst [vmem:[#allocation3 + $0x20] sm:$0xff] %v344
    %446 = vst [vmem:[#allocation3 + $0x28] sm:$0xff] %v414
    %447 = vst [vmem:[#allocation3 + $0x30] sm:$0xff] %v348
    %448 = vst [vmem:[#allocation3 + $0x38] sm:$0xff] %v350
    %449 = vst [vmem:[#allocation3 + $0x40] sm:$0xff] %v419
    %450 = vst [vmem:[#allocation3 + $0x48] sm:$0xff] %v352
    %451 = vst [vmem:[#allocation3 + $0x50] sm:$0xff] %v354
    %452 = vst [vmem:[#allocation3 + $0x58] sm:$0xff] %v422
    %453 = vst [vmem:[#allocation3 + $0x60] sm:$0xff] %v358
    %454 = vst [vmem:[#allocation3 + $0x68] sm:$0xff] %v360
    %455 = vst [vmem:[#allocation3 + $0x70] sm:$0xff] %v427
    %456 = vst [vmem:[#allocation3 + $0x78] sm:$0xff] %v362
    %457 = vst [vmem:[#allocation3 + $0x80] sm:$0xff] %v364
    %458 = vst [vmem:[#allocation3 + $0x88] sm:$0xff] %v430
    %459 = vst [vmem:[#allocation3 + $0x90] sm:$0xff] %v368
    %460 = vst [vmem:[#allocation3 + $0x98] sm:$0xff] %v370
    %461 = vst [vmem:[#allocation3 + $0xa0] sm:$0xff] %v435
    %462 = vst [vmem:[#allocation3 + $0xa8] sm:$0xff] %v372
    %463 = vst [vmem:[#allocation3 + $0xb0] sm:$0xff] %v374
    %464 = vst [vmem:[#allocation3 + $0xb8] sm:$0xff] %v438
    %v465 = vld [vmem:[#allocation2] sm:$0xff]
    %v466 = vld [vmem:[#allocation3] sm:$0xff]
    %v467 = vld [vmem:[#allocation3 + $0x8] sm:$0xff]
    %v468 = vld [vmem:[#allocation3 + $0x10] sm:$0xff]
    %v469 = vpack.c.bf16 %v465, %v465
    %v502 = vunpack.c.l.b16 %v51
    %v503 = vunpack.c.h.b16 %v51
    %v504 = vunpack.c.l.b16 %v52
    %v505 = vunpack.c.l.b16 %v53
    %v506 = vunpack.c.h.b16 %v53
    %v507 = vunpack.c.l.b16 %v54
    %v508 = vunpack.c.l.b16 %v55
    %v509 = vunpack.c.h.b16 %v55
    %v510 = vunpack.c.l.b16 %v56
    %v511 = vunpack.c.l.b16 %v57
    %v512 = vunpack.c.h.b16 %v57
    %v513 = vunpack.c.l.b16 %v58
    %v514 = vunpack.c.l.b16 %v59
    %v515 = vunpack.c.h.b16 %v59
    %v516 = vunpack.c.l.b16 %v60
    %v517 = vunpack.c.l.b16 %v61
    %v518 = vunpack.c.h.b16 %v61
    %v519 = vunpack.c.l.b16 %v62
    %v520 = vunpack.c.l.b16 %v63
    %v521 = vunpack.c.h.b16 %v63
    %v522 = vunpack.c.l.b16 %v64
    %v523 = vunpack.c.l.b16 %v65
    %v524 = vunpack.c.h.b16 %v65
    %v525 = vunpack.c.l.b16 %v66
    %v526 = vunpack.c.l.b16 %v67
    %v527 = vunpack.c.h.b16 %v67
    %v528 = vunpack.c.l.b16 %v68
    %v529 = vunpack.c.l.b16 %v69
    %v530 = vunpack.c.h.b16 %v69
    %v531 = vunpack.c.l.b16 %v70
    %v532 = vunpack.c.l.b16 %v71
    %v533 = vunpack.c.h.b16 %v71
    %v534 = vunpack.c.l.b16 %v72
    %v535 = vunpack.c.l.b16 %v73
    %v536 = vunpack.c.h.b16 %v73
    %v537 = vunpack.c.l.b16 %v74
    %v538 = vunpack.c.l.b16 %v75
    %v539 = vunpack.c.h.b16 %v75
    %v540 = vunpack.c.l.b16 %v76
    %v541 = vunpack.c.l.b16 %v77
    %v542 = vunpack.c.h.b16 %v77
    %v543 = vunpack.c.l.b16 %v78
    %v544 = vunpack.c.l.b16 %v79
    %v545 = vunpack.c.h.b16 %v79
    %v546 = vunpack.c.l.b16 %v80
    %v547 = vunpack.c.l.b16 %v81
    %v548 = vunpack.c.h.b16 %v81
    %v549 = vunpack.c.l.b16 %v82
    %v550 = vpack.c.b16 %v505, %v502
    %v551 = vpack.c.b16 %v506, %v503
    %v552 = vpack.c.b16 %v507, %v504
    %v553 = vpack.c.b16 %v511, %v508
    %v554 = vpack.c.b16 %v512, %v509
    %v555 = vpack.c.b16 %v513, %v510
    %v556 = vpack.c.b16 %v517, %v514
    %v557 = vpack.c.b16 %v518, %v515
    %v558 = vpack.c.b16 %v519, %v516
    %v559 = vpack.c.b16 %v523, %v520
    %v560 = vpack.c.b16 %v524, %v521
    %v561 = vpack.c.b16 %v525, %v522
    %v562 = vpack.c.b16 %v529, %v526
    %v563 = vpack.c.b16 %v530, %v527
    %v564 = vpack.c.b16 %v531, %v528
    %v565 = vpack.c.b16 %v535, %v532
    %v566 = vpack.c.b16 %v536, %v533
    %v567 = vpack.c.b16 %v537, %v534
    %v568 = vpack.c.b16 %v541, %v538
    %v569 = vpack.c.b16 %v542, %v539
    %v570 = vpack.c.b16 %v543, %v540
    %v571 = vpack.c.b16 %v547, %v544
    %v572 = vpack.c.b16 %v548, %v545
    %v573 = vpack.c.b16 %v549, %v546
    %598 = vmatprep.subr.bf16.mxu0 %v551
    %599 = vmatpush1.bf16.msra.mxu0 %v550
    %600 = vmatprep.subr.bf16.mxu0 %v554
    %601 = vmatpush1.bf16.msra.mxu0 %v553
    %602 = vmatprep.subr.bf16.mxu0 %v557
    %603 = vmatpush1.bf16.msra.mxu0 %v556
    %604 = vmatprep.subr.bf16.mxu0 %v560
    %605 = vmatpush1.bf16.msra.mxu0 %v559
    %606 = vmatprep.subr.bf16.mxu0 %v563
    %607 = vmatpush1.bf16.msra.mxu0 %v562
    %608 = vmatprep.subr.bf16.mxu0 %v566
    %609 = vmatpush1.bf16.msra.mxu0 %v565
    %610 = vmatprep.subr.bf16.mxu0 %v569
    %611 = vmatpush1.bf16.msra.mxu0 %v568
    %612 = vmatprep.subr.bf16.mxu0 %v572
    %613 = vmatpush1.bf16.msra.mxu0 %v571
    %614 = vmatprep.subr.bf16.mxu0 0
    %615 = vmatpush1.bf16.msra.mxu0 0
    %616 = vmatprep.subr.bf16.mxu0 0
    %617 = vmatpush1.bf16.msra.mxu0 0
    %618 = vmatprep.subr.bf16.mxu0 0
    %619 = vmatpush1.bf16.msra.mxu0 0
    %620 = vmatprep.subr.bf16.mxu0 0
    %621 = vmatpush1.bf16.msra.mxu0 0
    %622 = vmatprep.subr.bf16.mxu0 0
    %623 = vmatpush1.bf16.msra.mxu0 0
    %624 = vmatprep.subr.bf16.mxu0 0
    %625 = vmatpush1.bf16.msra.mxu0 0
    %626 = vmatprep.subr.bf16.mxu0 0
    %627 = vmatpush1.bf16.msra.mxu0 0
    %628 = vmatprep.subr.bf16.mxu0 0
    %629 = vmatpush1.bf16.msra.mxu0 0
    %630 = vmatprep.mubr.bf16.mxu0 0
    %631 = vmatmul.mubr.bf16.gmra.mrb[0].mxu0 %v469
    %v632 = vpop.f32.mrb[0].mxu0
    %v633 = vadd.f32 0.0, %v632
    %v634 = vpop.f32.mrb[0].mxu0
    %v635 = vadd.f32 0.0, %v634
    %v636 = vpop.f32.mrb[0].mxu0
    %v637 = vpop.f32.mrb[0].mxu0
    %638 = vdwg.mxu0
    %639 = vmatprep.subr.bf16.mxu0 0
    %640 = vmatpush1.bf16.msra.mxu0 %v552
    %641 = vmatprep.subr.bf16.mxu0 0
    %642 = vmatpush1.bf16.msra.mxu0 %v555
    %643 = vmatprep.subr.bf16.mxu0 0
    %644 = vmatpush1.bf16.msra.mxu0 %v558
    %645 = vmatprep.subr.bf16.mxu0 0
    %646 = vmatpush1.bf16.msra.mxu0 %v561
    %647 = vmatprep.subr.bf16.mxu0 0
    %648 = vmatpush1.bf16.msra.mxu0 %v564
    %649 = vmatprep.subr.bf16.mxu0 0
    %650 = vmatpush1.bf16.msra.mxu0 %v567
    %651 = vmatprep.subr.bf16.mxu0 0
    %652 = vmatpush1.bf16.msra.mxu0 %v570
    %653 = vmatprep.subr.bf16.mxu0 0
    %654 = vmatpush1.bf16.msra.mxu0 %v573
    %655 = vmatprep.subr.bf16.mxu0 0
    %656 = vmatpush1.bf16.msra.mxu0 0
    %657 = vmatprep.subr.bf16.mxu0 0
    %658 = vmatpush1.bf16.msra.mxu0 0
    %659 = vmatprep.subr.bf16.mxu0 0
    %660 = vmatpush1.bf16.msra.mxu0 0
    %661 = vmatprep.subr.bf16.mxu0 0
    %662 = vmatpush1.bf16.msra.mxu0 0
    %663 = vmatprep.subr.bf16.mxu0 0
    %664 = vmatpush1.bf16.msra.mxu0 0
    %665 = vmatprep.subr.bf16.mxu0 0
    %666 = vmatpush1.bf16.msra.mxu0 0
    %667 = vmatprep.subr.bf16.mxu0 0
    %668 = vmatpush1.bf16.msra.mxu0 0
    %669 = vmatprep.subr.bf16.mxu0 0
    %670 = vmatpush1.bf16.msra.mxu0 0
    %671 = vmatprep.mubr.bf16.mxu0 0
    %672 = vmatmul.mubr.bf16.gmra.mrb[0].mxu0 %v469
    %v673 = vpop.f32.mrb[0].mxu0
    %v674 = vadd.f32 0.0, %v673
    %v675 = vpop.f32.mrb[0].mxu0
    %v676 = vpop.f32.mrb[0].mxu0
    %v677 = vpop.f32.mrb[0].mxu0
    %678 = vdwg.mxu0
    %v679 = vadd.f32 %v466, %v633
    %v680 = vxor.u32 %v679, 2147483648
    %v681 = vmul.f32 %v680, 1.442695
    %v682 = vpow.pop %v681
    %v683 = vadd.f32 %v682, 1.0
    %v684 = vrcp.pop %v683
    %v685 = vmul.f32 1.0, %v684
    %v686 = vadd.f32 %v467, %v635
    %v687 = vxor.u32 %v686, 2147483648
    %v688 = vmul.f32 %v687, 1.442695
    %v689 = vpow.pop %v688
    %v690 = vadd.f32 %v689, 1.0
    %v691 = vrcp.pop %v690
    %v692 = vmul.f32 1.0, %v691
    %v693 = vadd.f32 %v674, %v88
    %v694 = vmul.f32 %v685, %v693
    %v695 = vadd.f32 %v468, %v694
    %v696 = vtanh.pop %v695
    %v697 = vsub.f32 1.0, %v692
    %v698 = vmul.f32 %v697, %v696
    %v699 = vmul.f32 %v692, %v465
    %v700 = vadd.f32 %v698, %v699
    %v701 = vstv %s33
    %vm702 = vcmp.gt.s32.totalorder %v93, %v701
    %v703 = vsel %vm702, %v700, 0.0
    %704 = vst [vmem:[%s7] sm:$0xff] %v703
    %v705 = vsel %vm702, %v700, %v465
    %s706 = scalar_lea.vmem [#allocation3], 24
    %v707 = vld [vmem:[%s706] sm:$0xff]
    %v708 = vld [vmem:[%s706 + $0x8] sm:$0xff]
    %v709 = vld [vmem:[%s706 + $0x10] sm:$0xff]
    %v710 = vpack.c.bf16 %v705, %v705
    %711 = vmatprep.subr.bf16.mxu0 %v551
    %712 = vmatpush1.bf16.msra.mxu0 %v550
    %713 = vmatprep.subr.bf16.mxu0 %v554
    %714 = vmatpush1.bf16.msra.mxu0 %v553
    %715 = vmatprep.subr.bf16.mxu0 %v557
    %716 = vmatpush1.bf16.msra.mxu0 %v556
    %717 = vmatprep.subr.bf16.mxu0 %v560
    %718 = vmatpush1.bf16.msra.mxu0 %v559
    %719 = vmatprep.subr.bf16.mxu0 %v563
    %720 = vmatpush1.bf16.msra.mxu0 %v562
    %721 = vmatprep.subr.bf16.mxu0 %v566
    %722 = vmatpush1.bf16.msra.mxu0 %v565
    %723 = vmatprep.subr.bf16.mxu0 %v569
    %724 = vmatpush1.bf16.msra.mxu0 %v568
    %725 = vmatprep.subr.bf16.mxu0 %v572
    %726 = vmatpush1.bf16.msra.mxu0 %v571
    %727 = vmatprep.subr.bf16.mxu0 0
    %728 = vmatpush1.bf16.msra.mxu0 0
    %729 = vmatprep.subr.bf16.mxu0 0
    %730 = vmatpush1.bf16.msra.mxu0 0
    %731 = vmatprep.subr.bf16.mxu0 0
    %732 = vmatpush1.bf16.msra.mxu0 0
    %733 = vmatprep.subr.bf16.mxu0 0
    %734 = vmatpush1.bf16.msra.mxu0 0
    %735 = vmatprep.subr.bf16.mxu0 0
    %736 = vmatpush1.bf16.msra.mxu0 0
    %737 = vmatprep.subr.bf16.mxu0 0
    %738 = vmatpush1.bf16.msra.mxu0 0
    %739 = vmatprep.subr.bf16.mxu0 0
    %740 = vmatpush1.bf16.msra.mxu0 0
    %741 = vmatprep.subr.bf16.mxu0 0
    %742 = vmatpush1.bf16.msra.mxu0 0
    %743 = vmatprep.mubr.bf16.mxu0 0
    %744 = vmatmul.mubr.bf16.gmra.mrb[0].mxu0 %v710
    %v745 = vpop.f32.mrb[0].mxu0
    %v746 = vadd.f32 0.0, %v745
    %v747 = vpop.f32.mrb[0].mxu0
    %v748 = vadd.f32 0.0, %v747
    %v749 = vpop.f32.mrb[0].mxu0
    %v750 = vpop.f32.mrb[0].mxu0
    %751 = vdwg.mxu0
    %752 = vmatprep.subr.bf16.mxu0 0
    %753 = vmatpush1.bf16.msra.mxu0 %v552
    %754 = vmatprep.subr.bf16.mxu0 0
    %755 = vmatpush1.bf16.msra.mxu0 %v555
    %756 = vmatprep.subr.bf16.mxu0 0
    %757 = vmatpush1.bf16.msra.mxu0 %v558
    %758 = vmatprep.subr.bf16.mxu0 0
    %759 = vmatpush1.bf16.msra.mxu0 %v561
    %760 = vmatprep.subr.bf16.mxu0 0
    %761 = vmatpush1.bf16.msra.mxu0 %v564
    %762 = vmatprep.subr.bf16.mxu0 0
    %763 = vmatpush1.bf16.msra.mxu0 %v567
    %764 = vmatprep.subr.bf16.mxu0 0
    %765 = vmatpush1.bf16.msra.mxu0 %v570
    %766 = vmatprep.subr.bf16.mxu0 0
    %767 = vmatpush1.bf16.msra.mxu0 %v573
    %768 = vmatprep.subr.bf16.mxu0 0
    %769 = vmatpush1.bf16.msra.mxu0 0
    %770 = vmatprep.subr.bf16.mxu0 0
    %771 = vmatpush1.bf16.msra.mxu0 0
    %772 = vmatprep.subr.bf16.mxu0 0
    %773 = vmatpush1.bf16.msra.mxu0 0
    %774 = vmatprep.subr.bf16.mxu0 0
    %775 = vmatpush1.bf16.msra.mxu0 0
    %776 = vmatprep.subr.bf16.mxu0 0
    %777 = vmatpush1.bf16.msra.mxu0 0
    %778 = vmatprep.subr.bf16.mxu0 0
    %779 = vmatpush1.bf16.msra.mxu0 0
    %780 = vmatprep.subr.bf16.mxu0 0
    %781 = vmatpush1.bf16.msra.mxu0 0
    %782 = vmatprep.subr.bf16.mxu0 0
    %783 = vmatpush1.bf16.msra.mxu0 0
    %784 = vmatprep.mubr.bf16.mxu0 0
    %785 = vmatmul.mubr.bf16.gmra.mrb[0].mxu0 %v710
    %v786 = vpop.f32.mrb[0].mxu0
    %v787 = vadd.f32 0.0, %v786
    %v788 = vpop.f32.mrb[0].mxu0
    %v789 = vpop.f32.mrb[0].mxu0
    %v790 = vpop.f32.mrb[0].mxu0
    %791 = vdwg.mxu0
    %v792 = vadd.f32 %v707, %v746
    %v793 = vxor.u32 %v792, 2147483648
    %v794 = vmul.f32 %v793, 1.442695
    %v795 = vpow.pop %v794
    %v796 = vadd.f32 %v795, 1.0
    %v797 = vrcp.pop %v796
    %v798 = vmul.f32 1.0, %v797
    %v799 = vadd.f32 %v708, %v748
    %v800 = vxor.u32 %v799, 2147483648
    %v801 = vmul.f32 %v800, 1.442695
    %v802 = vpow.pop %v801
    %v803 = vadd.f32 %v802, 1.0
    %v804 = vrcp.pop %v803
    %v805 = vmul.f32 1.0, %v804
    %v806 = vadd.f32 %v787, %v88
    %v807 = vmul.f32 %v798, %v806
    %v808 = vadd.f32 %v709, %v807
    %v809 = vtanh.pop %v808
    %v810 = vsub.f32 1.0, %v805
    %v811 = vmul.f32 %v810, %v809
    %v812 = vmul.f32 %v805, %v705
    %v813 = vadd.f32 %v811, %v812
    %s814 = sadd.s32 %s33, 1
    %v815 = vstv %s814
    %vm816 = vcmp.gt.s32.totalorder %v93, %v815
    %v817 = vsel %vm816, %v813, 0.0
    %s818 = scalar_lea.vmem %s7, 8
    %819 = vst [vmem:[%s818] sm:$0xff] %v817
    %v820 = vsel %vm816, %v813, %v705
    %s821 = scalar_lea.vmem [#allocation3], 48
    %v822 = vld [vmem:[%s821] sm:$0xff]
    %v823 = vld [vmem:[%s821 + $0x8] sm:$0xff]
    %v824 = vld [vmem:[%s821 + $0x10] sm:$0xff]
    %v825 = vpack.c.bf16 %v820, %v820
    %826 = vmatprep.subr.bf16.mxu0 %v551
    %827 = vmatpush1.bf16.msra.mxu0 %v550
    %828 = vmatprep.subr.bf16.mxu0 %v554
    %829 = vmatpush1.bf16.msra.mxu0 %v553
    %830 = vmatprep.subr.bf16.mxu0 %v557
    %831 = vmatpush1.bf16.msra.mxu0 %v556
    %832 = vmatprep.subr.bf16.mxu0 %v560
    %833 = vmatpush1.bf16.msra.mxu0 %v559
    %834 = vmatprep.subr.bf16.mxu0 %v563
    %835 = vmatpush1.bf16.msra.mxu0 %v562
    %836 = vmatprep.subr.bf16.mxu0 %v566
    %837 = vmatpush1.bf16.msra.mxu0 %v565
    %838 = vmatprep.subr.bf16.mxu0 %v569
    %839 = vmatpush1.bf16.msra.mxu0 %v568
    %840 = vmatprep.subr.bf16.mxu0 %v572
    %841 = vmatpush1.bf16.msra.mxu0 %v571
    %842 = vmatprep.subr.bf16.mxu0 0
    %843 = vmatpush1.bf16.msra.mxu0 0
    %844 = vmatprep.subr.bf16.mxu0 0
    %845 = vmatpush1.bf16.msra.mxu0 0
    %846 = vmatprep.subr.bf16.mxu0 0
    %847 = vmatpush1.bf16.msra.mxu0 0
    %848 = vmatprep.subr.bf16.mxu0 0
    %849 = vmatpush1.bf16.msra.mxu0 0
    %850 = vmatprep.subr.bf16.mxu0 0
    %851 = vmatpush1.bf16.msra.mxu0 0
    %852 = vmatprep.subr.bf16.mxu0 0
    %853 = vmatpush1.bf16.msra.mxu0 0
    %854 = vmatprep.subr.bf16.mxu0 0
    %855 = vmatpush1.bf16.msra.mxu0 0
    %856 = vmatprep.subr.bf16.mxu0 0
    %857 = vmatpush1.bf16.msra.mxu0 0
    %858 = vmatprep.mubr.bf16.mxu0 0
    %859 = vmatmul.mubr.bf16.gmra.mrb[0].mxu0 %v825
    %v860 = vpop.f32.mrb[0].mxu0
    %v861 = vadd.f32 0.0, %v860
    %v862 = vpop.f32.mrb[0].mxu0
    %v863 = vadd.f32 0.0, %v862
    %v864 = vpop.f32.mrb[0].mxu0
    %v865 = vpop.f32.mrb[0].mxu0
    %866 = vdwg.mxu0
    %867 = vmatprep.subr.bf16.mxu0 0
    %868 = vmatpush1.bf16.msra.mxu0 %v552
    %869 = vmatprep.subr.bf16.mxu0 0
    %870 = vmatpush1.bf16.msra.mxu0 %v555
    %871 = vmatprep.subr.bf16.mxu0 0
    %872 = vmatpush1.bf16.msra.mxu0 %v558
    %873 = vmatprep.subr.bf16.mxu0 0
    %874 = vmatpush1.bf16.msra.mxu0 %v561
    %875 = vmatprep.subr.bf16.mxu0 0
    %876 = vmatpush1.bf16.msra.mxu0 %v564
    %877 = vmatprep.subr.bf16.mxu0 0
    %878 = vmatpush1.bf16.msra.mxu0 %v567
    %879 = vmatprep.subr.bf16.mxu0 0
    %880 = vmatpush1.bf16.msra.mxu0 %v570
    %881 = vmatprep.subr.bf16.mxu0 0
    %882 = vmatpush1.bf16.msra.mxu0 %v573
    %883 = vmatprep.subr.bf16.mxu0 0
    %884 = vmatpush1.bf16.msra.mxu0 0
    %885 = vmatprep.subr.bf16.mxu0 0
    %886 = vmatpush1.bf16.msra.mxu0 0
    %887 = vmatprep.subr.bf16.mxu0 0
    %888 = vmatpush1.bf16.msra.mxu0 0
    %889 = vmatprep.subr.bf16.mxu0 0
    %890 = vmatpush1.bf16.msra.mxu0 0
    %891 = vmatprep.subr.bf16.mxu0 0
    %892 = vmatpush1.bf16.msra.mxu0 0
    %893 = vmatprep.subr.bf16.mxu0 0
    %894 = vmatpush1.bf16.msra.mxu0 0
    %895 = vmatprep.subr.bf16.mxu0 0
    %896 = vmatpush1.bf16.msra.mxu0 0
    %897 = vmatprep.subr.bf16.mxu0 0
    %898 = vmatpush1.bf16.msra.mxu0 0
    %899 = vmatprep.mubr.bf16.mxu0 0
    %900 = vmatmul.mubr.bf16.gmra.mrb[0].mxu0 %v825
    %v901 = vpop.f32.mrb[0].mxu0
    %v902 = vadd.f32 0.0, %v901
    %v903 = vpop.f32.mrb[0].mxu0
    %v904 = vpop.f32.mrb[0].mxu0
    %v905 = vpop.f32.mrb[0].mxu0
    %906 = vdwg.mxu0
    %v907 = vadd.f32 %v822, %v861
    %v908 = vxor.u32 %v907, 2147483648
    %v909 = vmul.f32 %v908, 1.442695
    %v910 = vpow.pop %v909
    %v911 = vadd.f32 %v910, 1.0
    %v912 = vrcp.pop %v911
    %v913 = vmul.f32 1.0, %v912
    %v914 = vadd.f32 %v823, %v863
    %v915 = vxor.u32 %v914, 2147483648
    %v916 = vmul.f32 %v915, 1.442695
    %v917 = vpow.pop %v916
    %v918 = vadd.f32 %v917, 1.0
    %v919 = vrcp.pop %v918
    %v920 = vmul.f32 1.0, %v919
    %v921 = vadd.f32 %v902, %v88
    %v922 = vmul.f32 %v913, %v921
    %v923 = vadd.f32 %v824, %v922
    %v924 = vtanh.pop %v923
    %v925 = vsub.f32 1.0, %v920
    %v926 = vmul.f32 %v925, %v924
    %v927 = vmul.f32 %v920, %v820
    %v928 = vadd.f32 %v926, %v927
    %s929 = sadd.s32 %s33, 2
    %v930 = vstv %s929
    %vm931 = vcmp.gt.s32.totalorder %v93, %v930
    %v932 = vsel %vm931, %v928, 0.0
    %s933 = scalar_lea.vmem %s7, 16
    %934 = vst [vmem:[%s933] sm:$0xff] %v932
    %v935 = vsel %vm931, %v928, %v820
    %s936 = scalar_lea.vmem [#allocation3], 72
    %v937 = vld [vmem:[%s936] sm:$0xff]
    %v938 = vld [vmem:[%s936 + $0x8] sm:$0xff]
    %v939 = vld [vmem:[%s936 + $0x10] sm:$0xff]
    %v940 = vpack.c.bf16 %v935, %v935
    %941 = vmatprep.subr.bf16.mxu0 %v551
    %942 = vmatpush1.bf16.msra.mxu0 %v550
    %943 = vmatprep.subr.bf16.mxu0 %v554
    %944 = vmatpush1.bf16.msra.mxu0 %v553
    %945 = vmatprep.subr.bf16.mxu0 %v557
    %946 = vmatpush1.bf16.msra.mxu0 %v556
    %947 = vmatprep.subr.bf16.mxu0 %v560
    %948 = vmatpush1.bf16.msra.mxu0 %v559
    %949 = vmatprep.subr.bf16.mxu0 %v563
    %950 = vmatpush1.bf16.msra.mxu0 %v562
    %951 = vmatprep.subr.bf16.mxu0 %v566
    %952 = vmatpush1.bf16.msra.mxu0 %v565
    %953 = vmatprep.subr.bf16.mxu0 %v569
    %954 = vmatpush1.bf16.msra.mxu0 %v568
    %955 = vmatprep.subr.bf16.mxu0 %v572
    %956 = vmatpush1.bf16.msra.mxu0 %v571
    %957 = vmatprep.subr.bf16.mxu0 0
    %958 = vmatpush1.bf16.msra.mxu0 0
    %959 = vmatprep.subr.bf16.mxu0 0
    %960 = vmatpush1.bf16.msra.mxu0 0
    %961 = vmatprep.subr.bf16.mxu0 0
    %962 = vmatpush1.bf16.msra.mxu0 0
    %963 = vmatprep.subr.bf16.mxu0 0
    %964 = vmatpush1.bf16.msra.mxu0 0
    %965 = vmatprep.subr.bf16.mxu0 0
    %966 = vmatpush1.bf16.msra.mxu0 0
    %967 = vmatprep.subr.bf16.mxu0 0
    %968 = vmatpush1.bf16.msra.mxu0 0
    %969 = vmatprep.subr.bf16.mxu0 0
    %970 = vmatpush1.bf16.msra.mxu0 0
    %971 = vmatprep.subr.bf16.mxu0 0
    %972 = vmatpush1.bf16.msra.mxu0 0
    %973 = vmatprep.mubr.bf16.mxu0 0
    %974 = vmatmul.mubr.bf16.gmra.mrb[0].mxu0 %v940
    %v975 = vpop.f32.mrb[0].mxu0
    %v976 = vadd.f32 0.0, %v975
    %v977 = vpop.f32.mrb[0].mxu0
    %v978 = vadd.f32 0.0, %v977
    %v979 = vpop.f32.mrb[0].mxu0
    %v980 = vpop.f32.mrb[0].mxu0
    %981 = vdwg.mxu0
    %982 = vmatprep.subr.bf16.mxu0 0
    %983 = vmatpush1.bf16.msra.mxu0 %v552
    %984 = vmatprep.subr.bf16.mxu0 0
    %985 = vmatpush1.bf16.msra.mxu0 %v555
    %986 = vmatprep.subr.bf16.mxu0 0
    %987 = vmatpush1.bf16.msra.mxu0 %v558
    %988 = vmatprep.subr.bf16.mxu0 0
    %989 = vmatpush1.bf16.msra.mxu0 %v561
    %990 = vmatprep.subr.bf16.mxu0 0
    %991 = vmatpush1.bf16.msra.mxu0 %v564
    %992 = vmatprep.subr.bf16.mxu0 0
    %993 = vmatpush1.bf16.msra.mxu0 %v567
    %994 = vmatprep.subr.bf16.mxu0 0
    %995 = vmatpush1.bf16.msra.mxu0 %v570
    %996 = vmatprep.subr.bf16.mxu0 0
    %997 = vmatpush1.bf16.msra.mxu0 %v573
    %998 = vmatprep.subr.bf16.mxu0 0
    %999 = vmatpush1.bf16.msra.mxu0 0
    %1000 = vmatprep.subr.bf16.mxu0 0
    %1001 = vmatpush1.bf16.msra.mxu0 0
    %1002 = vmatprep.subr.bf16.mxu0 0
    %1003 = vmatpush1.bf16.msra.mxu0 0
    %1004 = vmatprep.subr.bf16.mxu0 0
    %1005 = vmatpush1.bf16.msra.mxu0 0
    %1006 = vmatprep.subr.bf16.mxu0 0
    %1007 = vmatpush1.bf16.msra.mxu0 0
    %1008 = vmatprep.subr.bf16.mxu0 0
    %1009 = vmatpush1.bf16.msra.mxu0 0
    %1010 = vmatprep.subr.bf16.mxu0 0
    %1011 = vmatpush1.bf16.msra.mxu0 0
    %1012 = vmatprep.subr.bf16.mxu0 0
    %1013 = vmatpush1.bf16.msra.mxu0 0
    %1014 = vmatprep.mubr.bf16.mxu0 0
    %1015 = vmatmul.mubr.bf16.gmra.mrb[0].mxu0 %v940
    %v1016 = vpop.f32.mrb[0].mxu0
    %v1017 = vadd.f32 0.0, %v1016
    %v1018 = vpop.f32.mrb[0].mxu0
    %v1019 = vpop.f32.mrb[0].mxu0
    %v1020 = vpop.f32.mrb[0].mxu0
    %1021 = vdwg.mxu0
    %v1022 = vadd.f32 %v937, %v976
    %v1023 = vxor.u32 %v1022, 2147483648
    %v1024 = vmul.f32 %v1023, 1.442695
    %v1025 = vpow.pop %v1024
    %v1026 = vadd.f32 %v1025, 1.0
    %v1027 = vrcp.pop %v1026
    %v1028 = vmul.f32 1.0, %v1027
    %v1029 = vadd.f32 %v938, %v978
    %v1030 = vxor.u32 %v1029, 2147483648
    %v1031 = vmul.f32 %v1030, 1.442695
    %v1032 = vpow.pop %v1031
    %v1033 = vadd.f32 %v1032, 1.0
    %v1034 = vrcp.pop %v1033
    %v1035 = vmul.f32 1.0, %v1034
    %v1036 = vadd.f32 %v1017, %v88
    %v1037 = vmul.f32 %v1028, %v1036
    %v1038 = vadd.f32 %v939, %v1037
    %v1039 = vtanh.pop %v1038
    %v1040 = vsub.f32 1.0, %v1035
    %v1041 = vmul.f32 %v1040, %v1039
    %v1042 = vmul.f32 %v1035, %v935
    %v1043 = vadd.f32 %v1041, %v1042
    %s1044 = sadd.s32 %s33, 3
    %v1045 = vstv %s1044
    %vm1046 = vcmp.gt.s32.totalorder %v93, %v1045
    %v1047 = vsel %vm1046, %v1043, 0.0
    %s1048 = scalar_lea.vmem %s7, 24
    %1049 = vst [vmem:[%s1048] sm:$0xff] %v1047
    %v1050 = vsel %vm1046, %v1043, %v935
    %s1051 = scalar_lea.vmem [#allocation3], 96
    %v1052 = vld [vmem:[%s1051] sm:$0xff]
    %v1053 = vld [vmem:[%s1051 + $0x8] sm:$0xff]
    %v1054 = vld [vmem:[%s1051 + $0x10] sm:$0xff]
    %v1055 = vpack.c.bf16 %v1050, %v1050
    %1056 = vmatprep.subr.bf16.mxu0 %v551
    %1057 = vmatpush1.bf16.msra.mxu0 %v550
    %1058 = vmatprep.subr.bf16.mxu0 %v554
    %1059 = vmatpush1.bf16.msra.mxu0 %v553
    %1060 = vmatprep.subr.bf16.mxu0 %v557
    %1061 = vmatpush1.bf16.msra.mxu0 %v556
    %1062 = vmatprep.subr.bf16.mxu0 %v560
    %1063 = vmatpush1.bf16.msra.mxu0 %v559
    %1064 = vmatprep.subr.bf16.mxu0 %v563
    %1065 = vmatpush1.bf16.msra.mxu0 %v562
    %1066 = vmatprep.subr.bf16.mxu0 %v566
    %1067 = vmatpush1.bf16.msra.mxu0 %v565
    %1068 = vmatprep.subr.bf16.mxu0 %v569
    %1069 = vmatpush1.bf16.msra.mxu0 %v568
    %1070 = vmatprep.subr.bf16.mxu0 %v572
    %1071 = vmatpush1.bf16.msra.mxu0 %v571
    %1072 = vmatprep.subr.bf16.mxu0 0
    %1073 = vmatpush1.bf16.msra.mxu0 0
    %1074 = vmatprep.subr.bf16.mxu0 0
    %1075 = vmatpush1.bf16.msra.mxu0 0
    %1076 = vmatprep.subr.bf16.mxu0 0
    %1077 = vmatpush1.bf16.msra.mxu0 0
    %1078 = vmatprep.subr.bf16.mxu0 0
    %1079 = vmatpush1.bf16.msra.mxu0 0
    %1080 = vmatprep.subr.bf16.mxu0 0
    %1081 = vmatpush1.bf16.msra.mxu0 0
    %1082 = vmatprep.subr.bf16.mxu0 0
    %1083 = vmatpush1.bf16.msra.mxu0 0
    %1084 = vmatprep.subr.bf16.mxu0 0
    %1085 = vmatpush1.bf16.msra.mxu0 0
    %1086 = vmatprep.subr.bf16.mxu0 0
    %1087 = vmatpush1.bf16.msra.mxu0 0
    %1088 = vmatprep.mubr.bf16.mxu0 0
    %1089 = vmatmul.mubr.bf16.gmra.mrb[0].mxu0 %v1055
    %v1090 = vpop.f32.mrb[0].mxu0
    %v1091 = vadd.f32 0.0, %v1090
    %v1092 = vpop.f32.mrb[0].mxu0
    %v1093 = vadd.f32 0.0, %v1092
    %v1094 = vpop.f32.mrb[0].mxu0
    %v1095 = vpop.f32.mrb[0].mxu0
    %1096 = vdwg.mxu0
    %1097 = vmatprep.subr.bf16.mxu0 0
    %1098 = vmatpush1.bf16.msra.mxu0 %v552
    %1099 = vmatprep.subr.bf16.mxu0 0
    %1100 = vmatpush1.bf16.msra.mxu0 %v555
    %1101 = vmatprep.subr.bf16.mxu0 0
    %1102 = vmatpush1.bf16.msra.mxu0 %v558
    %1103 = vmatprep.subr.bf16.mxu0 0
    %1104 = vmatpush1.bf16.msra.mxu0 %v561
    %1105 = vmatprep.subr.bf16.mxu0 0
    %1106 = vmatpush1.bf16.msra.mxu0 %v564
    %1107 = vmatprep.subr.bf16.mxu0 0
    %1108 = vmatpush1.bf16.msra.mxu0 %v567
    %1109 = vmatprep.subr.bf16.mxu0 0
    %1110 = vmatpush1.bf16.msra.mxu0 %v570
    %1111 = vmatprep.subr.bf16.mxu0 0
    %1112 = vmatpush1.bf16.msra.mxu0 %v573
    %1113 = vmatprep.subr.bf16.mxu0 0
    %1114 = vmatpush1.bf16.msra.mxu0 0
    %1115 = vmatprep.subr.bf16.mxu0 0
    %1116 = vmatpush1.bf16.msra.mxu0 0
    %1117 = vmatprep.subr.bf16.mxu0 0
    %1118 = vmatpush1.bf16.msra.mxu0 0
    %1119 = vmatprep.subr.bf16.mxu0 0
    %1120 = vmatpush1.bf16.msra.mxu0 0
    %1121 = vmatprep.subr.bf16.mxu0 0
    %1122 = vmatpush1.bf16.msra.mxu0 0
    %1123 = vmatprep.subr.bf16.mxu0 0
    %1124 = vmatpush1.bf16.msra.mxu0 0
    %1125 = vmatprep.subr.bf16.mxu0 0
    %1126 = vmatpush1.bf16.msra.mxu0 0
    %1127 = vmatprep.subr.bf16.mxu0 0
    %1128 = vmatpush1.bf16.msra.mxu0 0
    %1129 = vmatprep.mubr.bf16.mxu0 0
    %1130 = vmatmul.mubr.bf16.gmra.mrb[0].mxu0 %v1055
    %v1131 = vpop.f32.mrb[0].mxu0
    %v1132 = vadd.f32 0.0, %v1131
    %v1133 = vpop.f32.mrb[0].mxu0
    %v1134 = vpop.f32.mrb[0].mxu0
    %v1135 = vpop.f32.mrb[0].mxu0
    %1136 = vdwg.mxu0
    %v1137 = vadd.f32 %v1052, %v1091
    %v1138 = vxor.u32 %v1137, 2147483648
    %v1139 = vmul.f32 %v1138, 1.442695
    %v1140 = vpow.pop %v1139
    %v1141 = vadd.f32 %v1140, 1.0
    %v1142 = vrcp.pop %v1141
    %v1143 = vmul.f32 1.0, %v1142
    %v1144 = vadd.f32 %v1053, %v1093
    %v1145 = vxor.u32 %v1144, 2147483648
    %v1146 = vmul.f32 %v1145, 1.442695
    %v1147 = vpow.pop %v1146
    %v1148 = vadd.f32 %v1147, 1.0
    %v1149 = vrcp.pop %v1148
    %v1150 = vmul.f32 1.0, %v1149
    %v1151 = vadd.f32 %v1132, %v88
    %v1152 = vmul.f32 %v1143, %v1151
    %v1153 = vadd.f32 %v1054, %v1152
    %v1154 = vtanh.pop %v1153
    %v1155 = vsub.f32 1.0, %v1150
    %v1156 = vmul.f32 %v1155, %v1154
    %v1157 = vmul.f32 %v1150, %v1050
    %v1158 = vadd.f32 %v1156, %v1157
    %s1159 = sadd.s32 %s33, 4
    %v1160 = vstv %s1159
    %vm1161 = vcmp.gt.s32.totalorder %v93, %v1160
    %v1162 = vsel %vm1161, %v1158, 0.0
    %s1163 = scalar_lea.vmem %s7, 32
    %1164 = vst [vmem:[%s1163] sm:$0xff] %v1162
    %v1165 = vsel %vm1161, %v1158, %v1050
    %s1166 = scalar_lea.vmem [#allocation3], 120
    %v1167 = vld [vmem:[%s1166] sm:$0xff]
    %v1168 = vld [vmem:[%s1166 + $0x8] sm:$0xff]
    %v1169 = vld [vmem:[%s1166 + $0x10] sm:$0xff]
    %v1170 = vpack.c.bf16 %v1165, %v1165
    %1171 = vmatprep.subr.bf16.mxu0 %v551
    %1172 = vmatpush1.bf16.msra.mxu0 %v550
    %1173 = vmatprep.subr.bf16.mxu0 %v554
    %1174 = vmatpush1.bf16.msra.mxu0 %v553
    %1175 = vmatprep.subr.bf16.mxu0 %v557
    %1176 = vmatpush1.bf16.msra.mxu0 %v556
    %1177 = vmatprep.subr.bf16.mxu0 %v560
    %1178 = vmatpush1.bf16.msra.mxu0 %v559
    %1179 = vmatprep.subr.bf16.mxu0 %v563
    %1180 = vmatpush1.bf16.msra.mxu0 %v562
    %1181 = vmatprep.subr.bf16.mxu0 %v566
    %1182 = vmatpush1.bf16.msra.mxu0 %v565
    %1183 = vmatprep.subr.bf16.mxu0 %v569
    %1184 = vmatpush1.bf16.msra.mxu0 %v568
    %1185 = vmatprep.subr.bf16.mxu0 %v572
    %1186 = vmatpush1.bf16.msra.mxu0 %v571
    %1187 = vmatprep.subr.bf16.mxu0 0
    %1188 = vmatpush1.bf16.msra.mxu0 0
    %1189 = vmatprep.subr.bf16.mxu0 0
    %1190 = vmatpush1.bf16.msra.mxu0 0
    %1191 = vmatprep.subr.bf16.mxu0 0
    %1192 = vmatpush1.bf16.msra.mxu0 0
    %1193 = vmatprep.subr.bf16.mxu0 0
    %1194 = vmatpush1.bf16.msra.mxu0 0
    %1195 = vmatprep.subr.bf16.mxu0 0
    %1196 = vmatpush1.bf16.msra.mxu0 0
    %1197 = vmatprep.subr.bf16.mxu0 0
    %1198 = vmatpush1.bf16.msra.mxu0 0
    %1199 = vmatprep.subr.bf16.mxu0 0
    %1200 = vmatpush1.bf16.msra.mxu0 0
    %1201 = vmatprep.subr.bf16.mxu0 0
    %1202 = vmatpush1.bf16.msra.mxu0 0
    %1203 = vmatprep.mubr.bf16.mxu0 0
    %1204 = vmatmul.mubr.bf16.gmra.mrb[0].mxu0 %v1170
    %v1205 = vpop.f32.mrb[0].mxu0
    %v1206 = vadd.f32 0.0, %v1205
    %v1207 = vpop.f32.mrb[0].mxu0
    %v1208 = vadd.f32 0.0, %v1207
    %v1209 = vpop.f32.mrb[0].mxu0
    %v1210 = vpop.f32.mrb[0].mxu0
    %1211 = vdwg.mxu0
    %1212 = vmatprep.subr.bf16.mxu0 0
    %1213 = vmatpush1.bf16.msra.mxu0 %v552
    %1214 = vmatprep.subr.bf16.mxu0 0
    %1215 = vmatpush1.bf16.msra.mxu0 %v555
    %1216 = vmatprep.subr.bf16.mxu0 0
    %1217 = vmatpush1.bf16.msra.mxu0 %v558
    %1218 = vmatprep.subr.bf16.mxu0 0
    %1219 = vmatpush1.bf16.msra.mxu0 %v561
    %1220 = vmatprep.subr.bf16.mxu0 0
    %1221 = vmatpush1.bf16.msra.mxu0 %v564
    %1222 = vmatprep.subr.bf16.mxu0 0
    %1223 = vmatpush1.bf16.msra.mxu0 %v567
    %1224 = vmatprep.subr.bf16.mxu0 0
    %1225 = vmatpush1.bf16.msra.mxu0 %v570
    %1226 = vmatprep.subr.bf16.mxu0 0
    %1227 = vmatpush1.bf16.msra.mxu0 %v573
    %1228 = vmatprep.subr.bf16.mxu0 0
    %1229 = vmatpush1.bf16.msra.mxu0 0
    %1230 = vmatprep.subr.bf16.mxu0 0
    %1231 = vmatpush1.bf16.msra.mxu0 0
    %1232 = vmatprep.subr.bf16.mxu0 0
    %1233 = vmatpush1.bf16.msra.mxu0 0
    %1234 = vmatprep.subr.bf16.mxu0 0
    %1235 = vmatpush1.bf16.msra.mxu0 0
    %1236 = vmatprep.subr.bf16.mxu0 0
    %1237 = vmatpush1.bf16.msra.mxu0 0
    %1238 = vmatprep.subr.bf16.mxu0 0
    %1239 = vmatpush1.bf16.msra.mxu0 0
    %1240 = vmatprep.subr.bf16.mxu0 0
    %1241 = vmatpush1.bf16.msra.mxu0 0
    %1242 = vmatprep.subr.bf16.mxu0 0
    %1243 = vmatpush1.bf16.msra.mxu0 0
    %1244 = vmatprep.mubr.bf16.mxu0 0
    %1245 = vmatmul.mubr.bf16.gmra.mrb[0].mxu0 %v1170
    %v1246 = vpop.f32.mrb[0].mxu0
    %v1247 = vadd.f32 0.0, %v1246
    %v1248 = vpop.f32.mrb[0].mxu0
    %v1249 = vpop.f32.mrb[0].mxu0
    %v1250 = vpop.f32.mrb[0].mxu0
    %1251 = vdwg.mxu0
    %v1252 = vadd.f32 %v1167, %v1206
    %v1253 = vxor.u32 %v1252, 2147483648
    %v1254 = vmul.f32 %v1253, 1.442695
    %v1255 = vpow.pop %v1254
    %v1256 = vadd.f32 %v1255, 1.0
    %v1257 = vrcp.pop %v1256
    %v1258 = vmul.f32 1.0, %v1257
    %v1259 = vadd.f32 %v1168, %v1208
    %v1260 = vxor.u32 %v1259, 2147483648
    %v1261 = vmul.f32 %v1260, 1.442695
    %v1262 = vpow.pop %v1261
    %v1263 = vadd.f32 %v1262, 1.0
    %v1264 = vrcp.pop %v1263
    %v1265 = vmul.f32 1.0, %v1264
    %v1266 = vadd.f32 %v1247, %v88
    %v1267 = vmul.f32 %v1258, %v1266
    %v1268 = vadd.f32 %v1169, %v1267
    %v1269 = vtanh.pop %v1268
    %v1270 = vsub.f32 1.0, %v1265
    %v1271 = vmul.f32 %v1270, %v1269
    %v1272 = vmul.f32 %v1265, %v1165
    %v1273 = vadd.f32 %v1271, %v1272
    %s1274 = sadd.s32 %s33, 5
    %v1275 = vstv %s1274
    %vm1276 = vcmp.gt.s32.totalorder %v93, %v1275
    %v1277 = vsel %vm1276, %v1273, 0.0
    %s1278 = scalar_lea.vmem %s7, 40
    %1279 = vst [vmem:[%s1278] sm:$0xff] %v1277
    %v1280 = vsel %vm1276, %v1273, %v1165
    %s1281 = scalar_lea.vmem [#allocation3], 144
    %v1282 = vld [vmem:[%s1281] sm:$0xff]
    %v1283 = vld [vmem:[%s1281 + $0x8] sm:$0xff]
    %v1284 = vld [vmem:[%s1281 + $0x10] sm:$0xff]
    %v1285 = vpack.c.bf16 %v1280, %v1280
    %1286 = vmatprep.subr.bf16.mxu0 %v551
    %1287 = vmatpush1.bf16.msra.mxu0 %v550
    %1288 = vmatprep.subr.bf16.mxu0 %v554
    %1289 = vmatpush1.bf16.msra.mxu0 %v553
    %1290 = vmatprep.subr.bf16.mxu0 %v557
    %1291 = vmatpush1.bf16.msra.mxu0 %v556
    %1292 = vmatprep.subr.bf16.mxu0 %v560
    %1293 = vmatpush1.bf16.msra.mxu0 %v559
    %1294 = vmatprep.subr.bf16.mxu0 %v563
    %1295 = vmatpush1.bf16.msra.mxu0 %v562
    %1296 = vmatprep.subr.bf16.mxu0 %v566
    %1297 = vmatpush1.bf16.msra.mxu0 %v565
    %1298 = vmatprep.subr.bf16.mxu0 %v569
    %1299 = vmatpush1.bf16.msra.mxu0 %v568
    %1300 = vmatprep.subr.bf16.mxu0 %v572
    %1301 = vmatpush1.bf16.msra.mxu0 %v571
    %1302 = vmatprep.subr.bf16.mxu0 0
    %1303 = vmatpush1.bf16.msra.mxu0 0
    %1304 = vmatprep.subr.bf16.mxu0 0
    %1305 = vmatpush1.bf16.msra.mxu0 0
    %1306 = vmatprep.subr.bf16.mxu0 0
    %1307 = vmatpush1.bf16.msra.mxu0 0
    %1308 = vmatprep.subr.bf16.mxu0 0
    %1309 = vmatpush1.bf16.msra.mxu0 0
    %1310 = vmatprep.subr.bf16.mxu0 0
    %1311 = vmatpush1.bf16.msra.mxu0 0
    %1312 = vmatprep.subr.bf16.mxu0 0
    %1313 = vmatpush1.bf16.msra.mxu0 0
    %1314 = vmatprep.subr.bf16.mxu0 0
    %1315 = vmatpush1.bf16.msra.mxu0 0
    %1316 = vmatprep.subr.bf16.mxu0 0
    %1317 = vmatpush1.bf16.msra.mxu0 0
    %1318 = vmatprep.mubr.bf16.mxu0 0
    %1319 = vmatmul.mubr.bf16.gmra.mrb[0].mxu0 %v1285
    %v1320 = vpop.f32.mrb[0].mxu0
    %v1321 = vadd.f32 0.0, %v1320
    %v1322 = vpop.f32.mrb[0].mxu0
    %v1323 = vadd.f32 0.0, %v1322
    %v1324 = vpop.f32.mrb[0].mxu0
    %v1325 = vpop.f32.mrb[0].mxu0
    %1326 = vdwg.mxu0
    %1327 = vmatprep.subr.bf16.mxu0 0
    %1328 = vmatpush1.bf16.msra.mxu0 %v552
    %1329 = vmatprep.subr.bf16.mxu0 0
    %1330 = vmatpush1.bf16.msra.mxu0 %v555
    %1331 = vmatprep.subr.bf16.mxu0 0
    %1332 = vmatpush1.bf16.msra.mxu0 %v558
    %1333 = vmatprep.subr.bf16.mxu0 0
    %1334 = vmatpush1.bf16.msra.mxu0 %v561
    %1335 = vmatprep.subr.bf16.mxu0 0
    %1336 = vmatpush1.bf16.msra.mxu0 %v564
    %1337 = vmatprep.subr.bf16.mxu0 0
    %1338 = vmatpush1.bf16.msra.mxu0 %v567
    %1339 = vmatprep.subr.bf16.mxu0 0
    %1340 = vmatpush1.bf16.msra.mxu0 %v570
    %1341 = vmatprep.subr.bf16.mxu0 0
    %1342 = vmatpush1.bf16.msra.mxu0 %v573
    %1343 = vmatprep.subr.bf16.mxu0 0
    %1344 = vmatpush1.bf16.msra.mxu0 0
    %1345 = vmatprep.subr.bf16.mxu0 0
    %1346 = vmatpush1.bf16.msra.mxu0 0
    %1347 = vmatprep.subr.bf16.mxu0 0
    %1348 = vmatpush1.bf16.msra.mxu0 0
    %1349 = vmatprep.subr.bf16.mxu0 0
    %1350 = vmatpush1.bf16.msra.mxu0 0
    %1351 = vmatprep.subr.bf16.mxu0 0
    %1352 = vmatpush1.bf16.msra.mxu0 0
    %1353 = vmatprep.subr.bf16.mxu0 0
    %1354 = vmatpush1.bf16.msra.mxu0 0
    %1355 = vmatprep.subr.bf16.mxu0 0
    %1356 = vmatpush1.bf16.msra.mxu0 0
    %1357 = vmatprep.subr.bf16.mxu0 0
    %1358 = vmatpush1.bf16.msra.mxu0 0
    %1359 = vmatprep.mubr.bf16.mxu0 0
    %1360 = vmatmul.mubr.bf16.gmra.mrb[0].mxu0 %v1285
    %v1361 = vpop.f32.mrb[0].mxu0
    %v1362 = vadd.f32 0.0, %v1361
    %v1363 = vpop.f32.mrb[0].mxu0
    %v1364 = vpop.f32.mrb[0].mxu0
    %v1365 = vpop.f32.mrb[0].mxu0
    %1366 = vdwg.mxu0
    %v1367 = vadd.f32 %v1282, %v1321
    %v1368 = vxor.u32 %v1367, 2147483648
    %v1369 = vmul.f32 %v1368, 1.442695
    %v1370 = vpow.pop %v1369
    %v1371 = vadd.f32 %v1370, 1.0
    %v1372 = vrcp.pop %v1371
    %v1373 = vmul.f32 1.0, %v1372
    %v1374 = vadd.f32 %v1283, %v1323
    %v1375 = vxor.u32 %v1374, 2147483648
    %v1376 = vmul.f32 %v1375, 1.442695
    %v1377 = vpow.pop %v1376
    %v1378 = vadd.f32 %v1377, 1.0
    %v1379 = vrcp.pop %v1378
    %v1380 = vmul.f32 1.0, %v1379
    %v1381 = vadd.f32 %v1362, %v88
    %v1382 = vmul.f32 %v1373, %v1381
    %v1383 = vadd.f32 %v1284, %v1382
    %v1384 = vtanh.pop %v1383
    %v1385 = vsub.f32 1.0, %v1380
    %v1386 = vmul.f32 %v1385, %v1384
    %v1387 = vmul.f32 %v1380, %v1280
    %v1388 = vadd.f32 %v1386, %v1387
    %s1389 = sadd.s32 %s33, 6
    %v1390 = vstv %s1389
    %vm1391 = vcmp.gt.s32.totalorder %v93, %v1390
    %v1392 = vsel %vm1391, %v1388, 0.0
    %s1393 = scalar_lea.vmem %s7, 48
    %1394 = vst [vmem:[%s1393] sm:$0xff] %v1392
    %v1395 = vsel %vm1391, %v1388, %v1280
    %s1396 = scalar_lea.vmem [#allocation3], 168
    %v1397 = vld [vmem:[%s1396] sm:$0xff]
    %v1398 = vld [vmem:[%s1396 + $0x8] sm:$0xff]
    %v1399 = vld [vmem:[%s1396 + $0x10] sm:$0xff]
    %v1400 = vpack.c.bf16 %v1395, %v1395
    %1401 = vmatprep.subr.bf16.mxu0 %v551
    %1402 = vmatpush1.bf16.msra.mxu0 %v550
    %1403 = vmatprep.subr.bf16.mxu0 %v554
    %1404 = vmatpush1.bf16.msra.mxu0 %v553
    %1405 = vmatprep.subr.bf16.mxu0 %v557
    %1406 = vmatpush1.bf16.msra.mxu0 %v556
    %1407 = vmatprep.subr.bf16.mxu0 %v560
    %1408 = vmatpush1.bf16.msra.mxu0 %v559
    %1409 = vmatprep.subr.bf16.mxu0 %v563
    %1410 = vmatpush1.bf16.msra.mxu0 %v562
    %1411 = vmatprep.subr.bf16.mxu0 %v566
    %1412 = vmatpush1.bf16.msra.mxu0 %v565
    %1413 = vmatprep.subr.bf16.mxu0 %v569
    %1414 = vmatpush1.bf16.msra.mxu0 %v568
    %1415 = vmatprep.subr.bf16.mxu0 %v572
    %1416 = vmatpush1.bf16.msra.mxu0 %v571
    %1417 = vmatprep.subr.bf16.mxu0 0
    %1418 = vmatpush1.bf16.msra.mxu0 0
    %1419 = vmatprep.subr.bf16.mxu0 0
    %1420 = vmatpush1.bf16.msra.mxu0 0
    %1421 = vmatprep.subr.bf16.mxu0 0
    %1422 = vmatpush1.bf16.msra.mxu0 0
    %1423 = vmatprep.subr.bf16.mxu0 0
    %1424 = vmatpush1.bf16.msra.mxu0 0
    %1425 = vmatprep.subr.bf16.mxu0 0
    %1426 = vmatpush1.bf16.msra.mxu0 0
    %1427 = vmatprep.subr.bf16.mxu0 0
    %1428 = vmatpush1.bf16.msra.mxu0 0
    %1429 = vmatprep.subr.bf16.mxu0 0
    %1430 = vmatpush1.bf16.msra.mxu0 0
    %1431 = vmatprep.subr.bf16.mxu0 0
    %1432 = vmatpush1.bf16.msra.mxu0 0
    %1433 = vmatprep.mubr.bf16.mxu0 0
    %1434 = vmatmul.mubr.bf16.gmra.mrb[0].mxu0 %v1400
    %v1435 = vpop.f32.mrb[0].mxu0
    %v1436 = vadd.f32 0.0, %v1435
    %v1437 = vpop.f32.mrb[0].mxu0
    %v1438 = vadd.f32 0.0, %v1437
    %v1439 = vpop.f32.mrb[0].mxu0
    %v1440 = vpop.f32.mrb[0].mxu0
    %1441 = vdwg.mxu0
    %1442 = vmatprep.subr.bf16.mxu0 0
    %1443 = vmatpush1.bf16.msra.mxu0 %v552
    %1444 = vmatprep.subr.bf16.mxu0 0
    %1445 = vmatpush1.bf16.msra.mxu0 %v555
    %1446 = vmatprep.subr.bf16.mxu0 0
    %1447 = vmatpush1.bf16.msra.mxu0 %v558
    %1448 = vmatprep.subr.bf16.mxu0 0
    %1449 = vmatpush1.bf16.msra.mxu0 %v561
    %1450 = vmatprep.subr.bf16.mxu0 0
    %1451 = vmatpush1.bf16.msra.mxu0 %v564
    %1452 = vmatprep.subr.bf16.mxu0 0
    %1453 = vmatpush1.bf16.msra.mxu0 %v567
    %1454 = vmatprep.subr.bf16.mxu0 0
    %1455 = vmatpush1.bf16.msra.mxu0 %v570
    %1456 = vmatprep.subr.bf16.mxu0 0
    %1457 = vmatpush1.bf16.msra.mxu0 %v573
    %1458 = vmatprep.subr.bf16.mxu0 0
    %1459 = vmatpush1.bf16.msra.mxu0 0
    %1460 = vmatprep.subr.bf16.mxu0 0
    %1461 = vmatpush1.bf16.msra.mxu0 0
    %1462 = vmatprep.subr.bf16.mxu0 0
    %1463 = vmatpush1.bf16.msra.mxu0 0
    %1464 = vmatprep.subr.bf16.mxu0 0
    %1465 = vmatpush1.bf16.msra.mxu0 0
    %1466 = vmatprep.subr.bf16.mxu0 0
    %1467 = vmatpush1.bf16.msra.mxu0 0
    %1468 = vmatprep.subr.bf16.mxu0 0
    %1469 = vmatpush1.bf16.msra.mxu0 0
    %1470 = vmatprep.subr.bf16.mxu0 0
    %1471 = vmatpush1.bf16.msra.mxu0 0
    %1472 = vmatprep.subr.bf16.mxu0 0
    %1473 = vmatpush1.bf16.msra.mxu0 0
    %1474 = vmatprep.mubr.bf16.mxu0 0
    %1475 = vmatmul.mubr.bf16.gmra.mrb[0].mxu0 %v1400
    %v1476 = vpop.f32.mrb[0].mxu0
    %v1477 = vadd.f32 0.0, %v1476
    %v1478 = vpop.f32.mrb[0].mxu0
    %v1479 = vpop.f32.mrb[0].mxu0
    %v1480 = vpop.f32.mrb[0].mxu0
    %1481 = vdwg.mxu0
    %v1482 = vadd.f32 %v1397, %v1436
    %v1483 = vxor.u32 %v1482, 2147483648
    %v1484 = vmul.f32 %v1483, 1.442695
    %v1485 = vpow.pop %v1484
    %v1486 = vadd.f32 %v1485, 1.0
    %v1487 = vrcp.pop %v1486
    %v1488 = vmul.f32 1.0, %v1487
    %v1489 = vadd.f32 %v1398, %v1438
    %v1490 = vxor.u32 %v1489, 2147483648
    %v1491 = vmul.f32 %v1490, 1.442695
    %v1492 = vpow.pop %v1491
    %v1493 = vadd.f32 %v1492, 1.0
    %v1494 = vrcp.pop %v1493
    %v1495 = vmul.f32 1.0, %v1494
    %v1496 = vadd.f32 %v1477, %v88
    %v1497 = vmul.f32 %v1488, %v1496
    %v1498 = vadd.f32 %v1399, %v1497
    %v1499 = vtanh.pop %v1498
    %v1500 = vsub.f32 1.0, %v1495
    %v1501 = vmul.f32 %v1500, %v1499
    %v1502 = vmul.f32 %v1495, %v1395
    %v1503 = vadd.f32 %v1501, %v1502
    %s1504 = sadd.s32 %s33, 7
    %v1505 = vstv %s1504
    %vm1506 = vcmp.gt.s32.totalorder %v93, %v1505
    %v1507 = vsel %vm1506, %v1503, 0.0
    %s1508 = scalar_lea.vmem %s7, 56
    %1509 = vst [vmem:[%s1508] sm:$0xff] %v1507
    %v1510 = vsel %vm1506, %v1503, %v1395
    %1511 = vst [vmem:[#allocation2] sm:$0xff] %v1510
  $region37: #{plain_encoder_forward.1} parent=0 // pred_fallthru
    _
  // Predicated region
  $region38: #{plain_encoder_forward.1} parent=0 // pred_check
    %p1512 = pneg %p28
  $region39: #{plain_encoder_forward.1} parent=0 // pred_check_branch
    %1514 = sbr.rel (%p1512) target = $region41
  $region40: #{plain_encoder_forward.1} parent=0 // pred_region
    %v1515 = vld [vmem:[#allocation2] sm:$0xff]
    %1516 = vst [vmem:[%s8] sm:$0xff] %v1515
  $region41: #{plain_encoder_forward.1} parent=0 // pred_fallthru
    _
  // Predicated region
  $region42: #{plain_encoder_forward.1} parent=0 // pred_check
    _
  $region43: #{plain_encoder_forward.1} parent=0 // pred_check_branch
    %1518 = sbr.rel (0) target = $region45
  $region44: #{plain_encoder_forward.1} parent=0 // pred_region
    _
  $region45: #{plain_encoder_forward.1} parent=0 // pred_fallthru
    _
  // Predicated region
  $region46: #{plain_encoder_forward.1} parent=0 // pred_check
    _
  $region47: #{plain_encoder_forward.1} parent=0 // pred_check_branch
    %1520 = sbr.rel (0) target = $region49
  $region48: #{plain_encoder_forward.1} parent=0 // pred_region
    _
  $region49: #{plain_encoder_forward.1} parent=0 // pred_fallthru
    _
  // Predicated region
  $region50: #{plain_encoder_forward.1} parent=0 // pred_check
    _
  $region51: #{plain_encoder_forward.1} parent=0 // pred_check_branch
    %1522 = sbr.rel (0) target = $region53
  $region52: #{plain_encoder_forward.1} parent=0 // pred_region
    _
  $region53: #{plain_encoder_forward.1} parent=0 // pred_fallthru
    _
  // Predicated region
  $region54: #{plain_encoder_forward.1} parent=0 // pred_check
    _
  $region55: #{plain_encoder_forward.1} parent=0 // pred_check_branch
    %1524 = sbr.rel (0) target = $region57
  $region56: #{plain_encoder_forward.1} parent=0 // pred_region
    _
  $region57: #{plain_encoder_forward.1} parent=0 // pred_fallthru
    _

</llo_original>
